<compile_context>
chip_gen: v7x
topology: tpu7x:2x2x1
jax: 0.10.0
libtpu: 0.0.40
codegen_flags: <defaults>
</compile_context>

<pallas_src>
import math

import jax
import jax.numpy as jnp
from jax import lax
from jax.experimental import pallas as pl
from jax.experimental.pallas import tpu as pltpu


# ----------------------------------------------------------------------------- #
# Kernel
# ----------------------------------------------------------------------------- #
_INV_SQRT2 = 1.0 / math.sqrt(2.0)


def _geglu_kernel(x_ref, w01_ref, b01_ref, w2_ref, b2_ref, o_ref, xn_sc, acc_sc):
    """Grid = (row_tiles, h_chunks).  Row tile resident across the inner H axis."""
    kj = pl.program_id(1)

    # ---- First H chunk: LayerNorm (eps=1e-6, affine already folded into the
    #      gate weights) + zero the output accumulator.
    @pl.when(kj == 0)
    def _():
        x = x_ref[...].astype(jnp.float32)                       # (TM, C)
        mu = jnp.mean(x, axis=-1, keepdims=True)
        xc = x - mu
        var = jnp.mean(xc * xc, axis=-1, keepdims=True)
        xn_sc[...] = (xc * lax.rsqrt(var + 1e-6)).astype(xn_sc.dtype)
        acc_sc[...] = jnp.zeros_like(acc_sc)

    # ---- Fused gate matmul for this H chunk: one MXU pass for [w0_k | w1_k],
    #      f32 accumulation.  w01_ref is (C, 2*tile_h).
    th = w01_ref.shape[-1] // 2
    h01 = jnp.dot(xn_sc[...], w01_ref[...],
                  preferred_element_type=jnp.float32) + b01_ref[...]   # (TM, 2*th)
    h0 = h01[:, :th]
    h1 = h01[:, th:]

    # Exact (erf) GELU — matches nn.GELU(approximate='none'); gate immediately so
    # only one (TM, th) f32 temporary stays live.
    h = (0.5 * h0 * (1.0 + lax.erf(h0 * _INV_SQRT2))) * h1             # (TM, th)

    acc_sc[...] += jnp.dot(h.astype(w2_ref.dtype), w2_ref[...],
                           preferred_element_type=jnp.float32)          # (TM, C)

    # ---- Last H chunk: add output bias and store.
    @pl.when(kj == pl.num_programs(1) - 1)
    def _():
        o_ref[...] = (acc_sc[...] + b2_ref[...]).astype(o_ref.dtype)


# ----------------------------------------------------------------------------- #
# Planning helpers
# ----------------------------------------------------------------------------- #
def _round_up(v, m):
    return (v + m - 1) // m * m


def _vmem_capacity_bytes():
    """Physical VMEM of the current chip (per TensorCore); conservative fallback."""
    try:
        info = pltpu.get_tpu_info()
        for name in ("vmem_capacity_bytes", "vmem_size_bytes", "vmem_bytes"):
            cap = getattr(info, name, None)
            if cap:
                return int(cap)
    except Exception:
        pass
    return 64 * 2**20  # v7x per-TC size: the tightest real budget


def _footprint_bytes(C, H, tile_m, tile_h, mxu_bytes, io_bytes):
    """Rough VMEM footprint of one grid step (per TensorCore)."""
    hk = max(1, H // tile_h)
    wdepth = 2 if hk > 1 else 1                       # streamed (double-buf) vs resident
    weights = wdepth * (C * 2 * tile_h + tile_h * C) * mxu_bytes
    biases = wdepth * 2 * tile_h * 4 + C * 4
    streams = 2 * tile_m * C * io_bytes * 2           # x + out row tiles, double-buffered
    scratch = tile_m * C * (mxu_bytes + 4)            # xn (mxu dtype) + f32 accumulator
    temps = tile_m * (2 * tile_h) * 4 + tile_m * tile_h * 4   # h01, h (f32)
    return weights + biases + streams + scratch + temps


def _choose_tile_h(H, C, tile_m, mxu_bytes, budget, io_bytes=4):
    """Largest H chunk (multiple of 128 dividing H) whose footprint fits the budget."""
    if H % 128 != 0:
        return H                                      # no clean lane split -> keep whole
    if _footprint_bytes(C, H, tile_m, H, mxu_bytes, io_bytes) <= budget:
        return H
    th = (H // 2) // 128 * 128
    while th > 128:
        if H % th == 0 and _footprint_bytes(C, H, tile_m, th, mxu_bytes, io_bytes) <= budget:
            return th
        th -= 128
    return 128


def _choose_tile_m(M, requested, align=16):
    """Row tile: multiple of `align`, >=2 grid steps when possible, divides M if it can."""
    req = max(align, min(_round_up(int(requested), align), _round_up(M, align)))
    if M >= 2 * align:
        # guarantee at least 2 grid steps so the "parallel" axis can use both v7x cores
        req = min(req, max(align, (M // 2) // align * align))
    if M % align == 0:
        t = req
        while t >= align:
            if M % t == 0:                            # skip the pad/slice HBM round trip
                return t
            t -= align
    return req


# ----------------------------------------------------------------------------- #
# One-time weight preparation (hoisted out of the per-call path)
# ----------------------------------------------------------------------------- #
def prepare_geglu_params(params, *, mxu_dtype=jnp.bfloat16, max_tile_m=256,
                         tile_h=None, vmem_budget_bytes=None):
    """Fold LN affine into the gate projection, fuse+block [w0|w1], cast to MXU dtype.

    params: ln_w/ln_b (C,), w0/w1 (C,H), b0/b1 (H,), w2 (H,C), b2 (C,)
            (nn.Linear weights pre-transposed to (in, out)).
    """
    C, H = params["w0"].shape
    gamma = params["ln_w"].astype(jnp.float32).reshape(C, 1)
    beta = params["ln_b"].astype(jnp.float32).reshape(1, C)

    w0 = params["w0"].astype(jnp.float32)
    w1 = params["w1"].astype(jnp.float32)
    # (xn*gamma + beta) @ W + b  ==  xn @ (gamma*W) + (beta @ W + b)   (done in f32)
    w0f, w1f = gamma * w0, gamma * w1
    b0f = params["b0"].astype(jnp.float32) + (beta @ w0)[0]
    b1f = params["b1"].astype(jnp.float32) + (beta @ w1)[0]

    if vmem_budget_bytes is None:
        vmem_budget_bytes = int(0.85 * _vmem_capacity_bytes())
    mxu_bytes = jnp.dtype(mxu_dtype).itemsize

    if tile_h is None:
        tile_h = _choose_tile_h(H, C, max_tile_m, mxu_bytes, vmem_budget_bytes)
    assert H % tile_h == 0 and (tile_h == H or tile_h % 128 == 0), \
        "tile_h must divide H and be a multiple of 128 (or equal H)"
    hk = H // tile_h

    # Blocked fused gate weight: block k = [w0[:, k*th:(k+1)*th] | w1[:, ...]]
    w0b = w0f.reshape(C, hk, tile_h).transpose(1, 0, 2)          # (Hk, C, th)
    w1b = w1f.reshape(C, hk, tile_h).transpose(1, 0, 2)
    w01 = jnp.concatenate([w0b, w1b], axis=2).astype(mxu_dtype)  # (Hk, C, 2*th)
    b01 = jnp.concatenate([b0f.reshape(hk, 1, tile_h),
                           b1f.reshape(hk, 1, tile_h)], axis=2).astype(jnp.float32)

    return {
        "w01": w01,                                        # (Hk, C, 2*tile_h), mxu dtype
        "b01": b01,                                        # (Hk, 1, 2*tile_h), f32
        "w2": params["w2"].astype(mxu_dtype),              # (H, C), mxu dtype
        "b2": params["b2"].reshape(1, C).astype(jnp.float32),
        "tile_h": int(tile_h),
        "mxu_dtype": mxu_dtype,
        "vmem_budget_bytes": int(vmem_budget_bytes),
    }


# ----------------------------------------------------------------------------- #
# Forward wrapper
# ----------------------------------------------------------------------------- #
def geglu_mlp(x, prepped, *, tile_m=256, interpret=False):
    """GeGluMlp forward.  x: (B, N, C); prepped: output of prepare_geglu_params."""
    B, N, C = x.shape
    M = B * N
    w01, b01 = prepped["w01"], prepped["b01"]
    w2, b2 = prepped["w2"], prepped["b2"]
    tile_h = prepped["tile_h"]
    hk = w01.shape[0]
    H = w2.shape[0]
    assert w01.shape[1] == C and w2.shape[1] == C

    tile_m = _choose_tile_m(M, tile_m)
    Mp = _round_up(M, tile_m)
    x2 = x.reshape(M, C)
    if Mp != M:
        x2 = jnp.pad(x2, ((0, Mp - M), (0, 0)))   # rows are independent -> inert padding

    # VMEM limit: sized from the actual footprint, never above ~85% of physical VMEM.
    mxu_bytes = jnp.dtype(prepped["mxu_dtype"]).itemsize
    io_bytes = jnp.dtype(x.dtype).itemsize
    fp = _footprint_bytes(C, H, tile_m, tile_h, mxu_bytes, io_bytes)
    budget = prepped["vmem_budget_bytes"]
    vmem_limit = int(min(budget, max(int(1.3 * fp), 32 * 2**20)))

    stream_w = hk > 1   # H-chunked: stream (double-buffer) weights; else keep resident.

    def wspec(shape, imap, resident):
        if resident:
            return pl.BlockSpec(shape, imap, pipeline_mode=pl.Buffered(1))
        return pl.BlockSpec(shape, imap)

    row_spec = pl.BlockSpec((tile_m, C), lambda i, k: (i, 0))

    out = pl.pallas_call(
        _geglu_kernel,
        out_shape=jax.ShapeDtypeStruct((Mp, C), x.dtype),
        grid_spec=pltpu.PrefetchScalarGridSpec(
            num_scalar_prefetch=0,
            grid=(Mp // tile_m, hk),
            in_specs=[
                row_spec,                                                   # x rows
                wspec((None, C, 2 * tile_h), lambda i, k: (k, 0, 0), not stream_w),  # [w0|w1]_k
                wspec((None, 1, 2 * tile_h), lambda i, k: (k, 0, 0), not stream_w),  # [b0|b1]_k
                wspec((tile_h, C), lambda i, k: (k, 0), not stream_w),               # w2_k
                wspec((1, C), lambda i, k: (0, 0), True),                            # b2
            ],
            out_specs=row_spec,
            scratch_shapes=[
                pltpu.VMEM((tile_m, C), prepped["mxu_dtype"]),   # normalized x
                pltpu.VMEM((tile_m, C), jnp.float32),            # output accumulator
            ],
        ),
        compiler_params=pltpu.CompilerParams(
            dimension_semantics=("parallel", "arbitrary"),
            vmem_limit_bytes=vmem_limit,
        ),
        interpret=interpret,
    )(x2, w01, b01, w2, b2)

    if Mp != M:
        out = out[:M]
    return out.reshape(B, N, C)


# ----------------------------------------------------------------------------- #
# Pure-JAX reference (matches the PyTorch forward, full f32)
# ----------------------------------------------------------------------------- #
def _reference(x, params):
    hp = lax.Precision.HIGHEST
    mu = jnp.mean(x, axis=-1, keepdims=True)
    var = jnp.mean((x - mu) ** 2, axis=-1, keepdims=True)
    xn = (x - mu) / jnp.sqrt(var + 1e-6) * params["ln_w"] + params["ln_b"]
    h0 = jnp.dot(xn, params["w0"], precision=hp) + params["b0"]
    h1 = jnp.dot(xn, params["w1"], precision=hp) + params["b1"]
    h = jax.nn.gelu(h0, approximate=False) * h1
    return jnp.dot(h, params["w2"], precision=hp) + params["b2"]


if __name__ == "__main__":
    # Small, lane-dense shapes (C, H multiples of 128); M = B*N = 256 rows so the
    # row grid gets >= 2 steps (megacore) without padding.
    B, N, C, H = 2, 128, 128, 256
    key = jax.random.PRNGKey(0)
    ks = jax.random.split(key, 8)

    x = jax.random.normal(ks[0], (B, N, C), dtype=jnp.float32)

    # Synthetic params; nn.Linear weights are (out, in) in torch — stored here
    # pre-transposed as (in, out) so the kernel does x @ W.
    params = {
        "ln_w": 1.0 + 0.1 * jax.random.normal(ks[1], (C,), dtype=jnp.float32),
        "ln_b": 0.1 * jax.random.normal(ks[2], (C,), dtype=jnp.float32),
        "w0": jax.random.normal(ks[3], (C, H), dtype=jnp.float32) / math.sqrt(C),
        "b0": 0.02 * jax.random.normal(ks[4], (H,), dtype=jnp.float32),
        "w1": jax.random.normal(ks[5], (C, H), dtype=jnp.float32) / math.sqrt(C),
        "b1": 0.02 * jax.random.normal(ks[6], (H,), dtype=jnp.float32),
        "w2": jax.random.normal(ks[7], (H, C), dtype=jnp.float32) / math.sqrt(H),
        "b2": jnp.zeros((C,), dtype=jnp.float32),
    }

    ref = _reference(x, params)

    # 1) f32-MXU path, single H chunk: tight check of the math (LN eps, folded
    #    affine, erf GELU, fused gate, biases).
    prep_f32 = prepare_geglu_params(params, mxu_dtype=jnp.float32)
    out_f32 = jax.block_until_ready(geglu_mlp(x, prep_f32, tile_m=256))
    assert out_f32.shape == (B, N, C)
    err = jnp.max(jnp.abs(out_f32 - ref))
    assert jnp.allclose(out_f32, ref, atol=5e-3, rtol=5e-3), f"f32 path max abs err {err}"

    # 2) f32-MXU path with forced H tiling (tile_h=128 -> 2 chunks): exercises the
    #    streamed-weight + accumulator path used on v7x for large hidden dims.
    prep_chunk = prepare_geglu_params(params, mxu_dtype=jnp.float32, tile_h=128)
    out_chunk = jax.block_until_ready(geglu_mlp(x, prep_chunk, tile_m=256))
    err = jnp.max(jnp.abs(out_chunk - ref))
    assert jnp.allclose(out_chunk, ref, atol=5e-3, rtol=5e-3), f"H-tiled path max abs err {err}"

    # 3) Default bf16-MXU path (production config): looser tolerance.
    prep_bf16 = prepare_geglu_params(params)          # mxu_dtype=bf16, tile_h auto
    out_bf16 = jax.block_until_ready(geglu_mlp(x, prep_bf16, tile_m=256))
    assert out_bf16.shape == (B, N, C)
    err = jnp.max(jnp.abs(out_bf16 - ref))
    assert jnp.allclose(out_bf16, ref, atol=1e-1, rtol=1e-1), f"bf16 path max abs err {err}"

    print("KERNEL_OK")
</pallas_src>

<mosaic_0001>
module attributes {stable_mosaic.version = 11 : i64} {
  func.func @_geglu_kernel(%arg0: i32, %arg1: i32, %arg2: memref<128x128xf32, #tpu.memory_space<vmem>>, %arg3: memref<1x128x512xf32, #tpu.memory_space<vmem>>, %arg4: memref<1x1x512xf32, #tpu.memory_space<vmem>>, %arg5: memref<256x128xf32, #tpu.memory_space<vmem>>, %arg6: memref<1x128xf32, #tpu.memory_space<vmem>>, %arg7: memref<128x128xf32, #tpu.memory_space<vmem>>, %arg8: memref<128x128xf32, #tpu.memory_space<vmem>>, %arg9: memref<128x128xf32, #tpu.memory_space<vmem>>) attributes {dimension_semantics = [#tpu.dimension_semantics<parallel>, #tpu.dimension_semantics<arbitrary>], iteration_bounds = array<i64: 2, 1>, scalar_prefetch = 0 : i64, scratch_operands = 2 : i64, tpu.core_type = #tpu.core_type<tc>, window_params = [{transform_indices = @transform_0, window_bounds = array<i64: 128, 128>}, {pipeline_mode = #tpu.pipeline_mode<synchronous>, transform_indices = @transform_1, window_bounds = array<i64: 1, 128, 512>}, {pipeline_mode = #tpu.pipeline_mode<synchronous>, transform_indices = @transform_2, window_bounds = array<i64: 1, 1, 512>}, {pipeline_mode = #tpu.pipeline_mode<synchronous>, transform_indices = @transform_3, window_bounds = array<i64: 256, 128>}, {pipeline_mode = #tpu.pipeline_mode<synchronous>, transform_indices = @transform_4, window_bounds = array<i64: 1, 128>}, {transform_indices = @transform_5, window_bounds = array<i64: 128, 128>}]} {
    %c0_i32 = arith.constant 0 : i32
    %0 = arith.cmpi eq, %arg1, %c0_i32 : i32
    %1 = arith.extui %0 : i1 to i32
    %c0_i32_0 = arith.constant 0 : i32
    %2 = arith.cmpi ne, %1, %c0_i32_0 : i32
    scf.if %2 {
      %c0_20 = arith.constant 0 : index
      %c0_21 = arith.constant 0 : index
      %30 = vector.load %arg2[%c0_20, %c0_21] : memref<128x128xf32, #tpu.memory_space<vmem>>, vector<128x128xf32>
      %cst_22 = arith.constant dense<0.000000e+00> : vector<128xf32>
      %31 = vector.multi_reduction <add>, %30, %cst_22 [1] : vector<128x128xf32> to vector<128xf32>
      %32 = vector.shape_cast %31 : vector<128xf32> to vector<128x1xf32>
      %cst_23 = arith.constant 1.280000e+02 : f32
      %33 = vector.broadcast %cst_23 : f32 to vector<128x1xf32>
      %34 = arith.divf %32, %33 : vector<128x1xf32>
      %35 = vector.broadcast %34 : vector<128x1xf32> to vector<128x128xf32>
      %36 = arith.subf %30, %35 : vector<128x128xf32>
      %37 = arith.mulf %36, %36 : vector<128x128xf32>
      %cst_24 = arith.constant dense<0.000000e+00> : vector<128xf32>
      %38 = vector.multi_reduction <add>, %37, %cst_24 [1] : vector<128x128xf32> to vector<128xf32>
      %39 = vector.shape_cast %38 : vector<128xf32> to vector<128x1xf32>
      %cst_25 = arith.constant 1.280000e+02 : f32
      %40 = vector.broadcast %cst_25 : f32 to vector<128x1xf32>
      %41 = arith.divf %39, %40 : vector<128x1xf32>
      %cst_26 = arith.constant 9.99999997E-7 : f32
      %42 = vector.broadcast %cst_26 : f32 to vector<128x1xf32>
      %43 = arith.addf %41, %42 : vector<128x1xf32>
      %44 = math.rsqrt %43 : vector<128x1xf32>
      %45 = vector.broadcast %44 : vector<128x1xf32> to vector<128x128xf32>
      %46 = arith.mulf %36, %45 : vector<128x128xf32>
      %c0_27 = arith.constant 0 : index
      %c0_28 = arith.constant 0 : index
      %47 = vector.load %arg8[%c0_27, %c0_28] : memref<128x128xf32, #tpu.memory_space<vmem>>, vector<128x128xf32>
      tpu.vector_store %arg8[%c0_27, %c0_28], %46 {strides = array<i32>} : memref<128x128xf32, #tpu.memory_space<vmem>>, vector<128x128xf32>,
      %cst_29 = arith.constant 0.000000e+00 : f32
      %48 = vector.broadcast %cst_29 : f32 to vector<128x128xf32>
      %c0_30 = arith.constant 0 : index
      %c0_31 = arith.constant 0 : index
      %49 = vector.load %arg9[%c0_30, %c0_31] : memref<128x128xf32, #tpu.memory_space<vmem>>, vector<128x128xf32>
      tpu.vector_store %arg9[%c0_30, %c0_31], %48 {strides = array<i32>} : memref<128x128xf32, #tpu.memory_space<vmem>>, vector<128x128xf32>,
    } else {
    }
    %c0 = arith.constant 0 : index
    %c0_1 = arith.constant 0 : index
    %3 = vector.load %arg8[%c0, %c0_1] : memref<128x128xf32, #tpu.memory_space<vmem>>, vector<128x128xf32>
    %c0_2 = arith.constant 0 : index
    %c0_3 = arith.constant 0 : index
    %c0_4 = arith.constant 0 : index
    %4 = vector.load %arg3[%c0_2, %c0_3, %c0_4] : memref<1x128x512xf32, #tpu.memory_space<vmem>>, vector<1x128x512xf32>
    %5 = vector.shape_cast %4 : vector<1x128x512xf32> to vector<128x512xf32>
    %cst = arith.constant dense<0.000000e+00> : vector<128x512xf32>
    %6 = tpu.matmul %3, %5, %cst {dimension_numbers = #tpu.dot_dimension_numbers<[1], [0], [0], [1], [0, 0, 1, 1], [], []>} : vector<128x128xf32>, vector<128x512xf32>, vector<128x512xf32> -> vector<128x512xf32>
    %c0_5 = arith.constant 0 : index
    %c0_6 = arith.constant 0 : index
    %c0_7 = arith.constant 0 : index
    %7 = vector.load %arg4[%c0_5, %c0_6, %c0_7] : memref<1x1x512xf32, #tpu.memory_space<vmem>>, vector<1x1x512xf32>
    %8 = vector.shape_cast %7 : vector<1x1x512xf32> to vector<1x512xf32>
    %9 = vector.broadcast %8 : vector<1x512xf32> to vector<128x512xf32>
    %10 = arith.addf %6, %9 : vector<128x512xf32>
    %11 = vector.extract_strided_slice %10 {offsets = [0, 0], sizes = [128, 256], strides = [1, 1]} : vector<128x512xf32> to vector<128x256xf32>
    %12 = vector.extract_strided_slice %10 {offsets = [0, 256], sizes = [128, 256], strides = [1, 1]} : vector<128x512xf32> to vector<128x256xf32>
    %cst_8 = arith.constant 5.000000e-01 : f32
    %13 = vector.broadcast %cst_8 : f32 to vector<128x256xf32>
    %14 = arith.mulf %13, %11 : vector<128x256xf32>
    %cst_9 = arith.constant 0.707106769 : f32
    %15 = vector.broadcast %cst_9 : f32 to vector<128x256xf32>
    %16 = arith.mulf %11, %15 : vector<128x256xf32>
    %17 = math.erf %16 : vector<128x256xf32>
    %cst_10 = arith.constant 1.000000e+00 : f32
    %18 = vector.broadcast %cst_10 : f32 to vector<128x256xf32>
    %19 = arith.addf %18, %17 : vector<128x256xf32>
    %20 = arith.mulf %14, %19 : vector<128x256xf32>
    %21 = arith.mulf %20, %12 : vector<128x256xf32>
    %c0_11 = arith.constant 0 : index
    %c0_12 = arith.constant 0 : index
    %22 = vector.load %arg9[%c0_11, %c0_12] : memref<128x128xf32, #tpu.memory_space<vmem>>, vector<128x128xf32>
    %c0_13 = arith.constant 0 : index
    %c0_14 = arith.constant 0 : index
    %23 = vector.load %arg5[%c0_13, %c0_14] : memref<256x128xf32, #tpu.memory_space<vmem>>, vector<256x128xf32>
    %cst_15 = arith.constant dense<0.000000e+00> : vector<128x128xf32>
    %24 = tpu.matmul %21, %23, %cst_15 {dimension_numbers = #tpu.dot_dimension_numbers<[1], [0], [0], [1], [0, 0, 1, 1], [], []>} : vector<128x256xf32>, vector<256x128xf32>, vector<128x128xf32> -> vector<128x128xf32>
    %25 = arith.addf %22, %24 : vector<128x128xf32>
    %c0_16 = arith.constant 0 : index
    %c0_17 = arith.constant 0 : index
    %26 = vector.load %arg9[%c0_16, %c0_17] : memref<128x128xf32, #tpu.memory_space<vmem>>, vector<128x128xf32>
    tpu.vector_store %arg9[%c0_16, %c0_17], %25 {strides = array<i32>} : memref<128x128xf32, #tpu.memory_space<vmem>>, vector<128x128xf32>,
    %c0_i32_18 = arith.constant 0 : i32
    %27 = arith.cmpi eq, %arg1, %c0_i32_18 : i32
    %28 = arith.extui %27 : i1 to i32
    %c0_i32_19 = arith.constant 0 : i32
    %29 = arith.cmpi ne, %28, %c0_i32_19 : i32
    scf.if %29 {
      %c0_20 = arith.constant 0 : index
      %c0_21 = arith.constant 0 : index
      %30 = vector.load %arg9[%c0_20, %c0_21] : memref<128x128xf32, #tpu.memory_space<vmem>>, vector<128x128xf32>
      %c0_22 = arith.constant 0 : index
      %c0_23 = arith.constant 0 : index
      %31 = vector.load %arg6[%c0_22, %c0_23] : memref<1x128xf32, #tpu.memory_space<vmem>>, vector<1x128xf32>
      %32 = vector.broadcast %31 : vector<1x128xf32> to vector<128x128xf32>
      %33 = arith.addf %30, %32 : vector<128x128xf32>
      %c0_24 = arith.constant 0 : index
      %c0_25 = arith.constant 0 : index
      %34 = vector.load %arg7[%c0_24, %c0_25] : memref<128x128xf32, #tpu.memory_space<vmem>>, vector<128x128xf32>
      tpu.vector_store %arg7[%c0_24, %c0_25], %33 {strides = array<i32>} : memref<128x128xf32, #tpu.memory_space<vmem>>, vector<128x128xf32>,
    } else {
    }
    return
  }
  func.func @transform_0(%arg0: i32, %arg1: i32) -> (i32, i32) {
    %c0_i32 = arith.constant 0 : i32
    %c0_i32_0 = arith.constant 0 : i32
    return %arg0, %c0_i32 : i32, i32
  }
  func.func @transform_1(%arg0: i32, %arg1: i32) -> (i32, i32, i32) {
    %c0_i32 = arith.constant 0 : i32
    %c0_i32_0 = arith.constant 0 : i32
    %c0_i32_1 = arith.constant 0 : i32
    return %arg1, %c0_i32, %c0_i32_0 : i32, i32, i32
  }
  func.func @transform_2(%arg0: i32, %arg1: i32) -> (i32, i32, i32) {
    %c0_i32 = arith.constant 0 : i32
    %c0_i32_0 = arith.constant 0 : i32
    %c0_i32_1 = arith.constant 0 : i32
    return %arg1, %c0_i32, %c0_i32_0 : i32, i32, i32
  }
  func.func @transform_3(%arg0: i32, %arg1: i32) -> (i32, i32) {
    %c0_i32 = arith.constant 0 : i32
    %c0_i32_0 = arith.constant 0 : i32
    return %arg1, %c0_i32 : i32, i32
  }
  func.func @transform_4(%arg0: i32, %arg1: i32) -> (i32, i32) {
    %c0_i32 = arith.constant 0 : i32
    %c0_i32_0 = arith.constant 0 : i32
    %c0_i32_1 = arith.constant 0 : i32
    return %c0_i32, %c0_i32_0 : i32, i32
  }
  func.func @transform_5(%arg0: i32, %arg1: i32) -> (i32, i32) {
    %c0_i32 = arith.constant 0 : i32
    %c0_i32_0 = arith.constant 0 : i32
    return %arg0, %c0_i32 : i32, i32
  }
}

</mosaic_0001>

<llo_original>
// kernel: tpu_custom_call.1
$region0: #{tpu_custom_call.1}
  #allocation0 [shape = 'u32[]', space=smem, size = 0x4, offset = 0x4, fixed_abs, tag = 'smem constant byte address 0x4 - core index']
  #allocation1 [shape = 'u32[144,128]{1,0:T(1,128)}', space=vmem, size = 0x12000, scoped, tag = 'internal scratch']
  #allocation2 [shape = 'f32[128,128]{1,0:T(8,128)}', space=vmem, size = 0x10000, scoped, tag = 'scratch operand']
  #allocation3 [shape = 'f32[128,128]{1,0:T(8,128)}', space=vmem, size = 0x10000, scoped, tag = 'scratch operand']
  %s0 = inlined_call_operand.hbm [shape: f32[256,128], index: 0, kind: input, shape index: {}]
  %s1 = inlined_call_operand.hbm [shape: f32[1,128,512], index: 1, kind: input, shape index: {}]
  %s2 = inlined_call_operand.vmem [shape: f32[1,1,512], index: 2, kind: input, shape index: {}]
  %s3 = inlined_call_operand.hbm [shape: f32[256,128], index: 3, kind: input, shape index: {}]
  %s4 = inlined_call_operand.vmem [shape: f32[1,128], index: 4, kind: input, shape index: {}]
  %s5 = inlined_call_operand.hbm [shape: f32[256,128], index: 5, kind: output, shape index: {}]
  %s6 = sld [smem:[#allocation0]]
  $region73: #{tpu_custom_call.1} parent=0
    _
  %s8 = ssub.s32 1, %s6
  %s9 = scalar_select 0, %s8, %s6
  $region1: #{tpu_custom_call.1} parent=0
    #allocation4 [shape = 'u8[131072]{0}', space=vmem, size = 0x20000, scoped, tag = 'input window, operand 0']
    #allocation5 [shape = 's32[2]{0}', space=sflag, size = 0x8, scoped, tag = 'scoped memory for tpu_custom_call.1']
    #allocation6 [shape = 's32[2]{0}', space=sflag, size = 0x8, scoped, tag = 'scoped memory for tpu_custom_call.1']
    #allocation7 [shape = 'u8[262144]{0}', space=vmem, size = 0x40000, scoped, tag = 'input window, operand 1, single buffered']
    #allocation8 [shape = 's32[1]{0}', space=sflag, size = 0x4, scoped, tag = 'scoped memory for tpu_custom_call.1']
    #allocation9 [shape = 'u8[131072]{0}', space=vmem, size = 0x20000, scoped, tag = 'input window, operand 3, single buffered']
    #allocation10 [shape = 'u8[131072]{0}', space=vmem, size = 0x20000, scoped, tag = 'output window, operand 0']
    %10 = vsyncpa [#allocation5], 0
    %s11 = scalar_lea.sflag [#allocation5], 1
    %12 = vsyncpa %s11, 0
    %13 = vsyncpa [#allocation8], 0
    %14 = vsyncpa [#allocation6], 0
    %s15 = scalar_lea.sflag [#allocation6], 1
    %16 = vsyncpa %s15, 0
    loop: start=0, step=1, limit=4
    $region2: #{tpu_custom_call.1} parent=1 // loop_pre_header
      _
    $region3: #{tpu_custom_call.1} parent=1 // loop_header
      %s18 = sphi 0, %s22
      %p19 = scmp.ge.s32.totalorder %s18, 4
      %s25 = sphi 0, %s37
      %s26 = sphi 0, %s33
      %s27 = sphi 0, %s25
      %s28 = sphi 0, %s26
      %s29 = sphi 0, %s27
      %s30 = sphi 0, %s28
      %s40 = sphi 0, %s42
      %s43 = sphi 0, %s40
      %s44 = sphi 0, %s43
      %s60 = sphi 0, %s44
      %s66 = sphi 0, %s68
      %s69 = sphi 0, %s66
      %s70 = sphi 0, %s69
      %s86 = sphi 0, %s70
      %s92 = sphi 0, %s94
      %s95 = sphi 0, %s92
      %s96 = sphi 0, %s95
      %s112 = sphi 0, %s96
      %s118 = sphi 0, %s120
      %s121 = sphi 0, %s118
      %s122 = sphi 0, %s121
      %s138 = sphi 0, %s122
      %s142 = sphi 0, %s142
      %s144 = sphi 0, %s142
      %s145 = sphi 0, %s144
      %s159 = sphi 0, %s145
      %s165 = sphi 0, %s167
      %s168 = sphi 0, %s165
      %s169 = sphi 0, %s168
      %s185 = sphi 0, %s169
    $region4: #{tpu_custom_call.1} parent=1 // loop_header_branch
      %21 = sbr.rel (%p19) target = $region8
    $region5: #{tpu_custom_call.1} parent=1 // loop_body
      %s23 = ssub.s32 %s18, 1
      %s24 = ssub.s32 %s18, 2
      %s31 = sadd.s32 1, %s26
      %p32 = scmp.ge.s32.totalorder %s31, 1
      %s33 = scalar_select %p32, 0, %s31
      %s34 = sadd.s32 1, %s25
      %s35 = scalar_select %p32, %s34, %s25
      %p36 = scmp.ge.s32.totalorder %s35, 2
      %s37 = scalar_select %p36, 0, %s35
      %s38 = ssub.s32 %s25, %s37
      %p39 = scmp.eq.s32.totalorder %s38, 0
      %s41 = sadd.s32 %s40, 1
      %s42 = scalar_select %p39, %s40, %s41
      %p45 = pneg %p39
      %p46 = scmp.eq.s32.totalorder %s18, 1
      %p47 = por %p45, %p46
      %p48 = scmp.ne.s32.totalorder %s40, %s43
      %p49 = scmp.eq.s32.totalorder %s18, 0
      %p50 = por %p48, %p49
      %p51 = scmp.ne.s32.totalorder %s40, %s43
      %p52 = scmp.eq.s32.totalorder %s23, 1
      %p53 = por %p51, %p52
      %p54 = scmp.ne.s32.totalorder %s43, %s44
      %p55 = scmp.eq.s32.totalorder %s23, 0
      %p56 = por %p54, %p55
      %p57 = scmp.ne.s32.totalorder %s43, %s44
      %p58 = scmp.eq.s32.totalorder %s24, 1
      %p59 = por %p57, %p58
      %p61 = scmp.ne.s32.totalorder %s44, %s60
      %p62 = scmp.eq.s32.totalorder %s24, 0
      %p63 = por %p61, %p62
      %s64 = ssub.s32 %s26, %s33
      %p65 = scmp.eq.s32.totalorder %s64, 0
      %s67 = sadd.s32 %s66, 1
      %s68 = scalar_select %p65, %s66, %s67
      %p71 = pneg %p65
      %p72 = scmp.eq.s32.totalorder %s18, 1
      %p73 = por %p71, %p72
      %p74 = scmp.ne.s32.totalorder %s66, %s69
      %p75 = scmp.eq.s32.totalorder %s18, 0
      %p76 = por %p74, %p75
      %p77 = scmp.ne.s32.totalorder %s66, %s69
      %p78 = scmp.eq.s32.totalorder %s23, 1
      %p79 = por %p77, %p78
      %p80 = scmp.ne.s32.totalorder %s69, %s70
      %p81 = scmp.eq.s32.totalorder %s23, 0
      %p82 = por %p80, %p81
      %p83 = scmp.ne.s32.totalorder %s69, %s70
      %p84 = scmp.eq.s32.totalorder %s24, 1
      %p85 = por %p83, %p84
      %p87 = scmp.ne.s32.totalorder %s70, %s86
      %p88 = scmp.eq.s32.totalorder %s24, 0
      %p89 = por %p87, %p88
      %s90 = ssub.s32 %s26, %s33
      %p91 = scmp.eq.s32.totalorder %s90, 0
      %s93 = sadd.s32 %s92, 1
      %s94 = scalar_select %p91, %s92, %s93
      %p97 = pneg %p91
      %p98 = scmp.eq.s32.totalorder %s18, 1
      %p99 = por %p97, %p98
      %p100 = scmp.ne.s32.totalorder %s92, %s95
      %p101 = scmp.eq.s32.totalorder %s18, 0
      %p102 = por %p100, %p101
      %p103 = scmp.ne.s32.totalorder %s92, %s95
      %p104 = scmp.eq.s32.totalorder %s23, 1
      %p105 = por %p103, %p104
      %p106 = scmp.ne.s32.totalorder %s95, %s96
      %p107 = scmp.eq.s32.totalorder %s23, 0
      %p108 = por %p106, %p107
      %p109 = scmp.ne.s32.totalorder %s95, %s96
      %p110 = scmp.eq.s32.totalorder %s24, 1
      %p111 = por %p109, %p110
      %p113 = scmp.ne.s32.totalorder %s96, %s112
      %p114 = scmp.eq.s32.totalorder %s24, 0
      %p115 = por %p113, %p114
      %s116 = ssub.s32 %s26, %s33
      %p117 = scmp.eq.s32.totalorder %s116, 0
      %s119 = sadd.s32 %s118, 1
      %s120 = scalar_select %p117, %s118, %s119
      %p123 = pneg %p117
      %p124 = scmp.eq.s32.totalorder %s18, 1
      %p125 = por %p123, %p124
      %p126 = scmp.ne.s32.totalorder %s118, %s121
      %p127 = scmp.eq.s32.totalorder %s18, 0
      %p128 = por %p126, %p127
      %p129 = scmp.ne.s32.totalorder %s118, %s121
      %p130 = scmp.eq.s32.totalorder %s23, 1
      %p131 = por %p129, %p130
      %p132 = scmp.ne.s32.totalorder %s121, %s122
      %p133 = scmp.eq.s32.totalorder %s23, 0
      %p134 = por %p132, %p133
      %p135 = scmp.ne.s32.totalorder %s121, %s122
      %p136 = scmp.eq.s32.totalorder %s24, 1
      %p137 = por %p135, %p136
      %p139 = scmp.ne.s32.totalorder %s122, %s138
      %p140 = scmp.eq.s32.totalorder %s24, 0
      %p141 = por %p139, %p140
      %s143 = sadd.s32 %s142, 1
      %p146 = scmp.eq.s32.totalorder %s18, 1
      %p147 = scmp.ne.s32.totalorder %s142, %s144
      %p148 = scmp.eq.s32.totalorder %s18, 0
      %p149 = por %p147, %p148
      %p150 = scmp.ne.s32.totalorder %s142, %s144
      %p151 = scmp.eq.s32.totalorder %s23, 1
      %p152 = por %p150, %p151
      %p153 = scmp.ne.s32.totalorder %s144, %s145
      %p154 = scmp.eq.s32.totalorder %s23, 0
      %p155 = por %p153, %p154
      %p156 = scmp.ne.s32.totalorder %s144, %s145
      %p157 = scmp.eq.s32.totalorder %s24, 1
      %p158 = por %p156, %p157
      %p160 = scmp.ne.s32.totalorder %s145, %s159
      %p161 = scmp.eq.s32.totalorder %s24, 0
      %p162 = por %p160, %p161
      %s163 = ssub.s32 %s25, %s37
      %p164 = scmp.eq.s32.totalorder %s163, 0
      %s166 = sadd.s32 %s165, 1
      %s167 = scalar_select %p164, %s165, %s166
      %p170 = pneg %p164
      %p171 = scmp.eq.s32.totalorder %s18, 1
      %p172 = por %p170, %p171
      %p173 = scmp.ne.s32.totalorder %s165, %s168
      %p174 = scmp.eq.s32.totalorder %s18, 0
      %p175 = por %p173, %p174
      %p176 = scmp.ne.s32.totalorder %s165, %s168
      %p177 = scmp.eq.s32.totalorder %s23, 1
      %p178 = por %p176, %p177
      %p179 = scmp.ne.s32.totalorder %s168, %s169
      %p180 = scmp.eq.s32.totalorder %s23, 0
      %p181 = por %p179, %p180
      %p182 = scmp.ne.s32.totalorder %s168, %s169
      %p183 = scmp.eq.s32.totalorder %s24, 1
      %p184 = por %p182, %p183
      %p186 = scmp.ne.s32.totalorder %s169, %s185
      %p187 = scmp.eq.s32.totalorder %s24, 0
      %p188 = por %p186, %p187
      %p189 = scmp.le.s32.totalorder 1, %s18
      %p190 = scmp.lt.s32.totalorder %s18, 3
      %p191 = pnand %p189, %p190
      %p192 = pneg %p191
      // Predicated region
      $region9: #{tpu_custom_call.1} parent=5 // pred_check
        _
      $region10: #{tpu_custom_call.1} parent=5 // pred_check_branch
        %194 = sbr.rel (%p191) target = $region12
      $region11: #{tpu_custom_call.1} parent=5 // pred_region
        %s195 = ssub.s32 %s18, 1
        // Predicated region
        $region13: #{tpu_custom_call.1} parent=11 // pred_check
          %p196 = pneg %p82
        $region14: #{tpu_custom_call.1} parent=11 // pred_check_branch
          %198 = sbr.rel (%p196) target = $region16
        $region15: #{tpu_custom_call.1} parent=11 // pred_region
          %s200 = ssub.s32 8192, 8192
          %201 = vsyncadd [#allocation8], %s200
          %s202 = smul.addr %s28, 64
          %s203 = smul.addr %s202, 128
          %s204 = scalar_lea.hbm %s1, %s203
          %s205 = sshll.u32 [#allocation7], 4
          %s206 = int_to_ptr.vmem [resolvable:$true] %s205
          %211 = dma.hbm_to_vmem [thread:$0]  %s204, 8192, %s206, [#allocation8], 512, 512, 32
        $region16: #{tpu_custom_call.1} parent=11 // pred_fallthru
          _
        // Predicated region
        $region17: #{tpu_custom_call.1} parent=11 // pred_check
          %p212 = pneg %p108
        $region18: #{tpu_custom_call.1} parent=11 // pred_check_branch
          %214 = sbr.rel (%p212) target = $region20
        $region19: #{tpu_custom_call.1} parent=11 // pred_region
          %p215 = scmp.lt.s32.totalorder %s28, 0
          %s216 = scalar_select %p215, %s28, 0
          %s217 = smul.addr %s216, 4
          %s218 = scalar_lea.vmem %s2, %s217
        $region20: #{tpu_custom_call.1} parent=11 // pred_fallthru
          _
        // Predicated region
        $region21: #{tpu_custom_call.1} parent=11 // pred_check
          %p219 = pneg %p134
        $region22: #{tpu_custom_call.1} parent=11 // pred_check_branch
          %221 = sbr.rel (%p219) target = $region24
        $region23: #{tpu_custom_call.1} parent=11 // pred_region
          %s222 = smul.u32 32, %s28
          %s224 = ssub.s32 4096, 4096
          %225 = vsyncadd [#allocation8], %s224
          %s226 = smul.addr %s222, 128
          %s227 = scalar_lea.hbm %s3, %s226
          %s228 = sshll.u32 [#allocation9], 4
          %s229 = int_to_ptr.vmem [resolvable:$true] %s228
          %234 = dma.hbm_to_vmem [thread:$0]  %s227, 4096, %s229, [#allocation8], 128, 128, 8
        $region24: #{tpu_custom_call.1} parent=11 // pred_fallthru
          _
        // Predicated region
        $region25: #{tpu_custom_call.1} parent=11 // pred_check
          %p235 = pneg %p155
        $region26: #{tpu_custom_call.1} parent=11 // pred_check_branch
          %237 = sbr.rel (%p235) target = $region28
        $region27: #{tpu_custom_call.1} parent=11 // pred_region
          _
        $region28: #{tpu_custom_call.1} parent=11 // pred_fallthru
          _
      $region12: #{tpu_custom_call.1} parent=5 // pred_fallthru
        _
      %p238 = scmp.lt.s32.totalorder %s18, 2
      // Predicated region
      $region29: #{tpu_custom_call.1} parent=5 // pred_check
        %p239 = pneg %p238
      $region30: #{tpu_custom_call.1} parent=5 // pred_check_branch
        %241 = sbr.rel (%p239) target = $region32
      $region31: #{tpu_custom_call.1} parent=5 // pred_region
        // Predicated region
        $region33: #{tpu_custom_call.1} parent=31 // pred_check
          %p242 = pneg %p50
        $region34: #{tpu_custom_call.1} parent=31 // pred_check_branch
          %244 = sbr.rel (%p242) target = $region36
        $region35: #{tpu_custom_call.1} parent=31 // pred_region
          %s245 = sand.u32 %s40, 1
          %s246 = scalar_lea.sflag [#allocation5], %s245
          %s247 = sand.u32 %s40, 1
          %s248 = smul.addr %s247, 128
          %s249 = scalar_lea.vmem [#allocation4], %s248
          %s250 = smul.u32 16, %s25
          %s252 = ssub.s32 2048, 2048
          %253 = vsyncadd %s246, %s252
          %s254 = smul.addr %s250, 128
          %s255 = scalar_lea.hbm %s0, %s254
          %s256 = sshll.u32 %s249, 4
          %s257 = int_to_ptr.vmem [resolvable:$true] %s256
          %262 = dma.hbm_to_vmem [thread:$0]  %s255, 2048, %s257, %s246, 128, 128, 8
        $region36: #{tpu_custom_call.1} parent=31 // pred_fallthru
          _
      $region32: #{tpu_custom_call.1} parent=5 // pred_fallthru
        _
      %p263 = scmp.le.s32.totalorder 1, %s18
      %p264 = scmp.lt.s32.totalorder %s18, 3
      %p265 = pnand %p263, %p264
      %p266 = pneg %p265
      // Predicated region
      $region37: #{tpu_custom_call.1} parent=5 // pred_check
        _
      $region38: #{tpu_custom_call.1} parent=5 // pred_check_branch
        %268 = sbr.rel (%p265) target = $region40
      $region39: #{tpu_custom_call.1} parent=5 // pred_region
        %s269 = ssub.s32 %s18, 1
        %s270 = sand.u32 %s43, 1
        %s271 = scalar_lea.sflag [#allocation5], %s270
        %s272 = sand.u32 %s43, 1
        %s273 = smul.addr %s272, 128
        %s274 = scalar_lea.vmem [#allocation4], %s273
        // Predicated region
        $region41: #{tpu_custom_call.1} parent=39 // pred_check
          %p275 = pneg %p56
        $region42: #{tpu_custom_call.1} parent=39 // pred_check_branch
          %277 = sbr.rel (%p275) target = $region44
        $region43: #{tpu_custom_call.1} parent=39 // pred_region
          %278 = dma.done %s271, 2048
        $region44: #{tpu_custom_call.1} parent=39 // pred_fallthru
          _
        // Predicated region
        $region45: #{tpu_custom_call.1} parent=39 // pred_check
          %p279 = pneg %p82
        $region46: #{tpu_custom_call.1} parent=39 // pred_check_branch
          %281 = sbr.rel (%p279) target = $region48
        $region47: #{tpu_custom_call.1} parent=39 // pred_region
          %282 = dma.done [#allocation8], 8192
        $region48: #{tpu_custom_call.1} parent=39 // pred_fallthru
          _
        // Predicated region
        $region49: #{tpu_custom_call.1} parent=39 // pred_check
          %p283 = pneg %p134
        $region50: #{tpu_custom_call.1} parent=39 // pred_check_branch
          %285 = sbr.rel (%p283) target = $region52
        $region51: #{tpu_custom_call.1} parent=39 // pred_region
          %286 = dma.done [#allocation8], 4096
        $region52: #{tpu_custom_call.1} parent=39 // pred_fallthru
          _
        %s287 = sand.u32 %s43, 1
        %s288 = scalar_lea.sflag [#allocation5], %s287
        %s289 = sand.u32 %s43, 1
        %s290 = smul.addr %s289, 128
        %s291 = scalar_lea.vmem [#allocation4], %s290
        %p292 = pneg %p56
        %p293 = pneg %p53
        %p294 = pneg %p82
        %p295 = pneg %p79
        %p296 = scmp.lt.s32.totalorder %s28, 0
        %s297 = scalar_select %p296, %s28, 0
        %s298 = smul.addr %s297, 4
        %s299 = scalar_lea.vmem %s2, %s298
        %p300 = pneg %p108
        %p301 = pneg %p105
        %p302 = pneg %p134
        %p303 = pneg %p131
        %p304 = pneg %p155
        %p305 = pneg %p152
        %p306 = pneg %p181
        %p307 = pneg %p178
        %s308 = sand.u32 %s168, 1
        %s309 = scalar_lea.sflag [#allocation6], %s308
        %s310 = sand.u32 %s168, 1
        %s311 = smul.addr %s310, 128
        %s312 = scalar_lea.vmem [#allocation10], %s311
        %s313 = smul.u32 16, %s27
        %p314 = scmp.lt.s32.totalorder %s28, 0
        %s315 = scalar_select %p314, %s28, 0
        %s316 = smul.addr %s315, 4
        %s317 = scalar_lea.vmem %s2, %s316
        %s318 = smul.u32 32, %s28
        %s319 = smul.u32 16, %s27
        %p320 = scmp.eq.s32.totalorder %s28, 0
        // Predicated region
        $region53: #{tpu_custom_call.1} parent=39 // pred_check
          %p321 = pneg %p320
        $region54: #{tpu_custom_call.1} parent=39 // pred_check_branch
          %323 = sbr.rel (%p321) target = $region56
        $region55: #{tpu_custom_call.1} parent=39 // pred_region
          %v324 = vld [vmem:[%s274] sm:$0xff]
          %v325 = vld [vmem:[%s274 + $0x8] sm:$0xff]
          %v326 = vld [vmem:[%s274 + $0x10] sm:$0xff]
          %v327 = vld [vmem:[%s274 + $0x18] sm:$0xff]
          %v328 = vld [vmem:[%s274 + $0x20] sm:$0xff]
          %v329 = vld [vmem:[%s274 + $0x28] sm:$0xff]
          %v330 = vld [vmem:[%s274 + $0x30] sm:$0xff]
          %v331 = vld [vmem:[%s274 + $0x38] sm:$0xff]
          %v332 = vld [vmem:[%s274 + $0x40] sm:$0xff]
          %v333 = vld [vmem:[%s274 + $0x48] sm:$0xff]
          %v334 = vld [vmem:[%s274 + $0x50] sm:$0xff]
          %v335 = vld [vmem:[%s274 + $0x58] sm:$0xff]
          %v336 = vld [vmem:[%s274 + $0x60] sm:$0xff]
          %v337 = vld [vmem:[%s274 + $0x68] sm:$0xff]
          %v338 = vld [vmem:[%s274 + $0x70] sm:$0xff]
          %v339 = vld [vmem:[%s274 + $0x78] sm:$0xff]
          %340 = vadd.xlane.f32.xlu0 %v324
          %v341 = vpop.xlane.xlu0 %340
          %342 = vadd.xlane.f32.xlu0 %v325
          %v343 = vpop.xlane.xlu0 %342
          %344 = vadd.xlane.f32.xlu0 %v326
          %v345 = vpop.xlane.xlu0 %344
          %346 = vadd.xlane.f32.xlu0 %v327
          %v347 = vpop.xlane.xlu0 %346
          %348 = vadd.xlane.f32.xlu0 %v328
          %v349 = vpop.xlane.xlu0 %348
          %350 = vadd.xlane.f32.xlu0 %v329
          %v351 = vpop.xlane.xlu0 %350
          %352 = vadd.xlane.f32.xlu0 %v330
          %v353 = vpop.xlane.xlu0 %352
          %354 = vadd.xlane.f32.xlu0 %v331
          %v355 = vpop.xlane.xlu0 %354
          %356 = vadd.xlane.f32.xlu0 %v332
          %v357 = vpop.xlane.xlu0 %356
          %358 = vadd.xlane.f32.xlu0 %v333
          %v359 = vpop.xlane.xlu0 %358
          %360 = vadd.xlane.f32.xlu0 %v334
          %v361 = vpop.xlane.xlu0 %360
          %362 = vadd.xlane.f32.xlu0 %v335
          %v363 = vpop.xlane.xlu0 %362
          %364 = vadd.xlane.f32.xlu0 %v336
          %v365 = vpop.xlane.xlu0 %364
          %366 = vadd.xlane.f32.xlu0 %v337
          %v367 = vpop.xlane.xlu0 %366
          %368 = vadd.xlane.f32.xlu0 %v338
          %v369 = vpop.xlane.xlu0 %368
          %370 = vadd.xlane.f32.xlu0 %v339
          %v371 = vpop.xlane.xlu0 %370
          %v372 = vrcp.pop 128.0
          %v373 = vmul.f32 %v341, %v372
          %v374 = vmul.f32 %v343, %v372
          %v375 = vmul.f32 %v345, %v372
          %v376 = vmul.f32 %v347, %v372
          %v377 = vmul.f32 %v349, %v372
          %v378 = vmul.f32 %v351, %v372
          %v379 = vmul.f32 %v353, %v372
          %v380 = vmul.f32 %v355, %v372
          %v381 = vmul.f32 %v357, %v372
          %v382 = vmul.f32 %v359, %v372
          %v383 = vmul.f32 %v361, %v372
          %v384 = vmul.f32 %v363, %v372
          %v385 = vmul.f32 %v365, %v372
          %v386 = vmul.f32 %v367, %v372
          %v387 = vmul.f32 %v369, %v372
          %v388 = vmul.f32 %v371, %v372
          %v389 = vsub.f32 %v324, %v373
          %v390 = vsub.f32 %v325, %v374
          %v391 = vsub.f32 %v326, %v375
          %v392 = vsub.f32 %v327, %v376
          %v393 = vsub.f32 %v328, %v377
          %v394 = vsub.f32 %v329, %v378
          %v395 = vsub.f32 %v330, %v379
          %v396 = vsub.f32 %v331, %v380
          %v397 = vsub.f32 %v332, %v381
          %v398 = vsub.f32 %v333, %v382
          %v399 = vsub.f32 %v334, %v383
          %v400 = vsub.f32 %v335, %v384
          %v401 = vsub.f32 %v336, %v385
          %v402 = vsub.f32 %v337, %v386
          %v403 = vsub.f32 %v338, %v387
          %v404 = vsub.f32 %v339, %v388
          %v405 = vmul.f32 %v389, %v389
          %v406 = vmul.f32 %v390, %v390
          %v407 = vmul.f32 %v391, %v391
          %v408 = vmul.f32 %v392, %v392
          %v409 = vmul.f32 %v393, %v393
          %v410 = vmul.f32 %v394, %v394
          %v411 = vmul.f32 %v395, %v395
          %v412 = vmul.f32 %v396, %v396
          %v413 = vmul.f32 %v397, %v397
          %v414 = vmul.f32 %v398, %v398
          %v415 = vmul.f32 %v399, %v399
          %v416 = vmul.f32 %v400, %v400
          %v417 = vmul.f32 %v401, %v401
          %v418 = vmul.f32 %v402, %v402
          %v419 = vmul.f32 %v403, %v403
          %v420 = vmul.f32 %v404, %v404
          %421 = vadd.xlane.f32.xlu0 %v405
          %v422 = vpop.xlane.xlu0 %421
          %423 = vadd.xlane.f32.xlu0 %v406
          %v424 = vpop.xlane.xlu0 %423
          %425 = vadd.xlane.f32.xlu0 %v407
          %v426 = vpop.xlane.xlu0 %425
          %427 = vadd.xlane.f32.xlu0 %v408
          %v428 = vpop.xlane.xlu0 %427
          %429 = vadd.xlane.f32.xlu0 %v409
          %v430 = vpop.xlane.xlu0 %429
          %431 = vadd.xlane.f32.xlu0 %v410
          %v432 = vpop.xlane.xlu0 %431
          %433 = vadd.xlane.f32.xlu0 %v411
          %v434 = vpop.xlane.xlu0 %433
          %435 = vadd.xlane.f32.xlu0 %v412
          %v436 = vpop.xlane.xlu0 %435
          %437 = vadd.xlane.f32.xlu0 %v413
          %v438 = vpop.xlane.xlu0 %437
          %439 = vadd.xlane.f32.xlu0 %v414
          %v440 = vpop.xlane.xlu0 %439
          %441 = vadd.xlane.f32.xlu0 %v415
          %v442 = vpop.xlane.xlu0 %441
          %443 = vadd.xlane.f32.xlu0 %v416
          %v444 = vpop.xlane.xlu0 %443
          %445 = vadd.xlane.f32.xlu0 %v417
          %v446 = vpop.xlane.xlu0 %445
          %447 = vadd.xlane.f32.xlu0 %v418
          %v448 = vpop.xlane.xlu0 %447
          %449 = vadd.xlane.f32.xlu0 %v419
          %v450 = vpop.xlane.xlu0 %449
          %451 = vadd.xlane.f32.xlu0 %v420
          %v452 = vpop.xlane.xlu0 %451
          %v453 = vmul.f32 %v422, %v372
          %v454 = vmul.f32 %v424, %v372
          %v455 = vmul.f32 %v426, %v372
          %v456 = vmul.f32 %v428, %v372
          %v457 = vmul.f32 %v430, %v372
          %v458 = vmul.f32 %v432, %v372
          %v459 = vmul.f32 %v434, %v372
          %v460 = vmul.f32 %v436, %v372
          %v461 = vmul.f32 %v438, %v372
          %v462 = vmul.f32 %v440, %v372
          %v463 = vmul.f32 %v442, %v372
          %v464 = vmul.f32 %v444, %v372
          %v465 = vmul.f32 %v446, %v372
          %v466 = vmul.f32 %v448, %v372
          %v467 = vmul.f32 %v450, %v372
          %v468 = vmul.f32 %v452, %v372
          %v469 = vadd.f32 %v453, 1e-06
          %v470 = vadd.f32 %v454, 1e-06
          %v471 = vadd.f32 %v455, 1e-06
          %v472 = vadd.f32 %v456, 1e-06
          %v473 = vadd.f32 %v457, 1e-06
          %v474 = vadd.f32 %v458, 1e-06
          %v475 = vadd.f32 %v459, 1e-06
          %v476 = vadd.f32 %v460, 1e-06
          %v477 = vadd.f32 %v461, 1e-06
          %v478 = vadd.f32 %v462, 1e-06
          %v479 = vadd.f32 %v463, 1e-06
          %v480 = vadd.f32 %v464, 1e-06
          %v481 = vadd.f32 %v465, 1e-06
          %v482 = vadd.f32 %v466, 1e-06
          %v483 = vadd.f32 %v467, 1e-06
          %v484 = vadd.f32 %v468, 1e-06
          %v485 = vrsqrt.pop %v469
          %v486 = vrsqrt.pop %v470
          %v487 = vrsqrt.pop %v471
          %v488 = vrsqrt.pop %v472
          %v489 = vrsqrt.pop %v473
          %v490 = vrsqrt.pop %v474
          %v491 = vrsqrt.pop %v475
          %v492 = vrsqrt.pop %v476
          %v493 = vrsqrt.pop %v477
          %v494 = vrsqrt.pop %v478
          %v495 = vrsqrt.pop %v479
          %v496 = vrsqrt.pop %v480
          %v497 = vrsqrt.pop %v481
          %v498 = vrsqrt.pop %v482
          %v499 = vrsqrt.pop %v483
          %v500 = vrsqrt.pop %v484
          %v501 = vmul.f32 %v389, %v485
          %v502 = vmul.f32 %v390, %v486
          %v503 = vmul.f32 %v391, %v487
          %v504 = vmul.f32 %v392, %v488
          %v505 = vmul.f32 %v393, %v489
          %v506 = vmul.f32 %v394, %v490
          %v507 = vmul.f32 %v395, %v491
          %v508 = vmul.f32 %v396, %v492
          %v509 = vmul.f32 %v397, %v493
          %v510 = vmul.f32 %v398, %v494
          %v511 = vmul.f32 %v399, %v495
          %v512 = vmul.f32 %v400, %v496
          %v513 = vmul.f32 %v401, %v497
          %v514 = vmul.f32 %v402, %v498
          %v515 = vmul.f32 %v403, %v499
          %v516 = vmul.f32 %v404, %v500
          %517 = vst [vmem:[#allocation2] sm:$0xff] %v501
          %518 = vst [vmem:[#allocation2 + $0x8] sm:$0xff] %v502
          %519 = vst [vmem:[#allocation2 + $0x10] sm:$0xff] %v503
          %520 = vst [vmem:[#allocation2 + $0x18] sm:$0xff] %v504
          %521 = vst [vmem:[#allocation2 + $0x20] sm:$0xff] %v505
          %522 = vst [vmem:[#allocation2 + $0x28] sm:$0xff] %v506
          %523 = vst [vmem:[#allocation2 + $0x30] sm:$0xff] %v507
          %524 = vst [vmem:[#allocation2 + $0x38] sm:$0xff] %v508
          %525 = vst [vmem:[#allocation2 + $0x40] sm:$0xff] %v509
          %526 = vst [vmem:[#allocation2 + $0x48] sm:$0xff] %v510
          %527 = vst [vmem:[#allocation2 + $0x50] sm:$0xff] %v511
          %528 = vst [vmem:[#allocation2 + $0x58] sm:$0xff] %v512
          %529 = vst [vmem:[#allocation2 + $0x60] sm:$0xff] %v513
          %530 = vst [vmem:[#allocation2 + $0x68] sm:$0xff] %v514
          %531 = vst [vmem:[#allocation2 + $0x70] sm:$0xff] %v515
          %532 = vst [vmem:[#allocation2 + $0x78] sm:$0xff] %v516
          %533 = vst [vmem:[#allocation3] sm:$0xff] 0.0
          %534 = vst [vmem:[#allocation3 + $0x8] sm:$0xff] 0.0
          %535 = vst [vmem:[#allocation3 + $0x10] sm:$0xff] 0.0
          %536 = vst [vmem:[#allocation3 + $0x18] sm:$0xff] 0.0
          %537 = vst [vmem:[#allocation3 + $0x20] sm:$0xff] 0.0
          %538 = vst [vmem:[#allocation3 + $0x28] sm:$0xff] 0.0
          %539 = vst [vmem:[#allocation3 + $0x30] sm:$0xff] 0.0
          %540 = vst [vmem:[#allocation3 + $0x38] sm:$0xff] 0.0
          %541 = vst [vmem:[#allocation3 + $0x40] sm:$0xff] 0.0
          %542 = vst [vmem:[#allocation3 + $0x48] sm:$0xff] 0.0
          %543 = vst [vmem:[#allocation3 + $0x50] sm:$0xff] 0.0
          %544 = vst [vmem:[#allocation3 + $0x58] sm:$0xff] 0.0
          %545 = vst [vmem:[#allocation3 + $0x60] sm:$0xff] 0.0
          %546 = vst [vmem:[#allocation3 + $0x68] sm:$0xff] 0.0
          %547 = vst [vmem:[#allocation3 + $0x70] sm:$0xff] 0.0
          %548 = vst [vmem:[#allocation3 + $0x78] sm:$0xff] 0.0
        $region56: #{tpu_custom_call.1} parent=39 // pred_fallthru
          _
        %v549 = vld [vmem:[#allocation2] sm:$0xff]
        %v550 = vld [vmem:[#allocation2 + $0x8] sm:$0xff]
        %v551 = vld [vmem:[#allocation2 + $0x10] sm:$0xff]
        %v552 = vld [vmem:[#allocation2 + $0x18] sm:$0xff]
        %v553 = vld [vmem:[#allocation2 + $0x20] sm:$0xff]
        %v554 = vld [vmem:[#allocation2 + $0x28] sm:$0xff]
        %v555 = vld [vmem:[#allocation2 + $0x30] sm:$0xff]
        %v556 = vld [vmem:[#allocation2 + $0x38] sm:$0xff]
        %v557 = vld [vmem:[#allocation2 + $0x40] sm:$0xff]
        %v558 = vld [vmem:[#allocation2 + $0x48] sm:$0xff]
        %v559 = vld [vmem:[#allocation2 + $0x50] sm:$0xff]
        %v560 = vld [vmem:[#allocation2 + $0x58] sm:$0xff]
        %v561 = vld [vmem:[#allocation2 + $0x60] sm:$0xff]
        %v562 = vld [vmem:[#allocation2 + $0x68] sm:$0xff]
        %v563 = vld [vmem:[#allocation2 + $0x70] sm:$0xff]
        %v564 = vld [vmem:[#allocation2 + $0x78] sm:$0xff]
        %v565 = vld [vmem:[#allocation7] sm:$0xff]
        %v566 = vld [vmem:[#allocation7 + $0x8] sm:$0xff]
        %v567 = vld [vmem:[#allocation7 + $0x10] sm:$0xff]
        %v568 = vld [vmem:[#allocation7 + $0x18] sm:$0xff]
        %v569 = vld [vmem:[#allocation7 + $0x20] sm:$0xff]
        %v570 = vld [vmem:[#allocation7 + $0x28] sm:$0xff]
        %v571 = vld [vmem:[#allocation7 + $0x30] sm:$0xff]
        %v572 = vld [vmem:[#allocation7 + $0x38] sm:$0xff]
        %v573 = vld [vmem:[#allocation7 + $0x40] sm:$0xff]
        %v574 = vld [vmem:[#allocation7 + $0x48] sm:$0xff]
        %v575 = vld [vmem:[#allocation7 + $0x50] sm:$0xff]
        %v576 = vld [vmem:[#allocation7 + $0x58] sm:$0xff]
        %v577 = vld [vmem:[#allocation7 + $0x60] sm:$0xff]
        %v578 = vld [vmem:[#allocation7 + $0x68] sm:$0xff]
        %v579 = vld [vmem:[#allocation7 + $0x70] sm:$0xff]
        %v580 = vld [vmem:[#allocation7 + $0x78] sm:$0xff]
        %v581 = vld [vmem:[#allocation7 + $0x80] sm:$0xff]
        %v582 = vld [vmem:[#allocation7 + $0x88] sm:$0xff]
        %v583 = vld [vmem:[#allocation7 + $0x90] sm:$0xff]
        %v584 = vld [vmem:[#allocation7 + $0x98] sm:$0xff]
        %v585 = vld [vmem:[#allocation7 + $0xa0] sm:$0xff]
        %v586 = vld [vmem:[#allocation7 + $0xa8] sm:$0xff]
        %v587 = vld [vmem:[#allocation7 + $0xb0] sm:$0xff]
        %v588 = vld [vmem:[#allocation7 + $0xb8] sm:$0xff]
        %v589 = vld [vmem:[#allocation7 + $0xc0] sm:$0xff]
        %v590 = vld [vmem:[#allocation7 + $0xc8] sm:$0xff]
        %v591 = vld [vmem:[#allocation7 + $0xd0] sm:$0xff]
        %v592 = vld [vmem:[#allocation7 + $0xd8] sm:$0xff]
        %v593 = vld [vmem:[#allocation7 + $0xe0] sm:$0xff]
        %v594 = vld [vmem:[#allocation7 + $0xe8] sm:$0xff]
        %v595 = vld [vmem:[#allocation7 + $0xf0] sm:$0xff]
        %v596 = vld [vmem:[#allocation7 + $0xf8] sm:$0xff]
        %v597 = vld [vmem:[#allocation7 + $0x100] sm:$0xff]
        %v598 = vld [vmem:[#allocation7 + $0x108] sm:$0xff]
        %v599 = vld [vmem:[#allocation7 + $0x110] sm:$0xff]
        %v600 = vld [vmem:[#allocation7 + $0x118] sm:$0xff]
        %v601 = vld [vmem:[#allocation7 + $0x120] sm:$0xff]
        %v602 = vld [vmem:[#allocation7 + $0x128] sm:$0xff]
        %v603 = vld [vmem:[#allocation7 + $0x130] sm:$0xff]
        %v604 = vld [vmem:[#allocation7 + $0x138] sm:$0xff]
        %v605 = vld [vmem:[#allocation7 + $0x140] sm:$0xff]
        %v606 = vld [vmem:[#allocation7 + $0x148] sm:$0xff]
        %v607 = vld [vmem:[#allocation7 + $0x150] sm:$0xff]
        %v608 = vld [vmem:[#allocation7 + $0x158] sm:$0xff]
        %v609 = vld [vmem:[#allocation7 + $0x160] sm:$0xff]
        %v610 = vld [vmem:[#allocation7 + $0x168] sm:$0xff]
        %v611 = vld [vmem:[#allocation7 + $0x170] sm:$0xff]
        %v612 = vld [vmem:[#allocation7 + $0x178] sm:$0xff]
        %v613 = vld [vmem:[#allocation7 + $0x180] sm:$0xff]
        %v614 = vld [vmem:[#allocation7 + $0x188] sm:$0xff]
        %v615 = vld [vmem:[#allocation7 + $0x190] sm:$0xff]
        %v616 = vld [vmem:[#allocation7 + $0x198] sm:$0xff]
        %v617 = vld [vmem:[#allocation7 + $0x1a0] sm:$0xff]
        %v618 = vld [vmem:[#allocation7 + $0x1a8] sm:$0xff]
        %v619 = vld [vmem:[#allocation7 + $0x1b0] sm:$0xff]
        %v620 = vld [vmem:[#allocation7 + $0x1b8] sm:$0xff]
        %v621 = vld [vmem:[#allocation7 + $0x1c0] sm:$0xff]
        %v622 = vld [vmem:[#allocation7 + $0x1c8] sm:$0xff]
        %v623 = vld [vmem:[#allocation7 + $0x1d0] sm:$0xff]
        %v624 = vld [vmem:[#allocation7 + $0x1d8] sm:$0xff]
        %v625 = vld [vmem:[#allocation7 + $0x1e0] sm:$0xff]
        %v626 = vld [vmem:[#allocation7 + $0x1e8] sm:$0xff]
        %v627 = vld [vmem:[#allocation7 + $0x1f0] sm:$0xff]
        %v628 = vld [vmem:[#allocation7 + $0x1f8] sm:$0xff]
        %v629 = vld [vmem:[%s317] sm:$0xf]
        %v631 = vlaneseq
        %v632 = vshrl.u32 %v631, 7
        %v633 = vsub.s32 0, %v632
        %v634 = vrot.slane %v629, %v633
        %v635 = vlaneseq
        %v636 = vshrl.u32 %v635, 7
        %v637 = vsub.s32 1, %v636
        %v638 = vrot.slane %v629, %v637
        %v639 = vlaneseq
        %v640 = vshrl.u32 %v639, 7
        %v641 = vsub.s32 2, %v640
        %v642 = vrot.slane %v629, %v641
        %v643 = vlaneseq
        %v644 = vshrl.u32 %v643, 7
        %v645 = vsub.s32 3, %v644
        %v646 = vrot.slane %v629, %v645
        %651 = vmatprep.subr.mxu0 %v566
        %652 = vmatpush1.msra.mxu0 %v565
        %653 = vmatprep.subr.mxu0 %v570
        %654 = vmatpush1.msra.mxu0 %v569
        %655 = vmatprep.subr.mxu0 %v574
        %656 = vmatpush1.msra.mxu0 %v573
        %657 = vmatprep.subr.mxu0 %v578
        %658 = vmatpush1.msra.mxu0 %v577
        %659 = vmatprep.subr.mxu0 %v582
        %660 = vmatpush1.msra.mxu0 %v581
        %661 = vmatprep.subr.mxu0 %v586
        %662 = vmatpush1.msra.mxu0 %v585
        %663 = vmatprep.subr.mxu0 %v590
        %664 = vmatpush1.msra.mxu0 %v589
        %665 = vmatprep.subr.mxu0 %v594
        %666 = vmatpush1.msra.mxu0 %v593
        %667 = vmatprep.subr.mxu0 %v598
        %668 = vmatpush1.msra.mxu0 %v597
        %669 = vmatprep.subr.mxu0 %v602
        %670 = vmatpush1.msra.mxu0 %v601
        %671 = vmatprep.subr.mxu0 %v606
        %672 = vmatpush1.msra.mxu0 %v605
        %673 = vmatprep.subr.mxu0 %v610
        %674 = vmatpush1.msra.mxu0 %v609
        %675 = vmatprep.subr.mxu0 %v614
        %676 = vmatpush1.msra.mxu0 %v613
        %677 = vmatprep.subr.mxu0 %v618
        %678 = vmatpush1.msra.mxu0 %v617
        %679 = vmatprep.subr.mxu0 %v622
        %680 = vmatpush1.msra.mxu0 %v621
        %681 = vmatprep.subr.mxu0 %v626
        %682 = vmatpush1.msra.mxu0 %v625
        %683 = vmatprep.subr.mxu0 0.0
        %684 = vmatpush1.msra.mxu0 0.0
        %685 = vmatprep.subr.mxu0 0.0
        %686 = vmatpush1.msra.mxu0 0.0
        %687 = vmatprep.subr.mxu0 0.0
        %688 = vmatpush1.msra.mxu0 0.0
        %689 = vmatprep.subr.mxu0 0.0
        %690 = vmatpush1.msra.mxu0 0.0
        %691 = vmatprep.subr.mxu0 0.0
        %692 = vmatpush1.msra.mxu0 0.0
        %693 = vmatprep.subr.mxu0 0.0
        %694 = vmatpush1.msra.mxu0 0.0
        %695 = vmatprep.subr.mxu0 0.0
        %696 = vmatpush1.msra.mxu0 0.0
        %697 = vmatprep.subr.mxu0 0.0
        %698 = vmatpush1.msra.mxu0 0.0
        %699 = vmatprep.subr.mxu0 0.0
        %700 = vmatpush1.msra.mxu0 0.0
        %701 = vmatprep.subr.mxu0 0.0
        %702 = vmatpush1.msra.mxu0 0.0
        %703 = vmatprep.subr.mxu0 0.0
        %704 = vmatpush1.msra.mxu0 0.0
        %705 = vmatprep.subr.mxu0 0.0
        %706 = vmatpush1.msra.mxu0 0.0
        %707 = vmatprep.subr.mxu0 0.0
        %708 = vmatpush1.msra.mxu0 0.0
        %709 = vmatprep.subr.mxu0 0.0
        %710 = vmatpush1.msra.mxu0 0.0
        %711 = vmatprep.subr.mxu0 0.0
        %712 = vmatpush1.msra.mxu0 0.0
        %713 = vmatprep.subr.mxu0 0.0
        %714 = vmatpush1.msra.mxu0 0.0
        %715 = vmatprep.mubr.f32.mxu0 0.0
        %716 = vmatmul.mubr.f32.gmra.mrb[0].mxu0 %v549
        %v717 = vpop.f32.mrb[0].mxu0
        %v718 = vadd.f32 %v634, %v717
        %v719 = vpop.f32.mrb[0].mxu0
        %v720 = vadd.f32 %v638, %v719
        %721 = vmatprep.mubr.f32.mxu0 0.0
        %722 = vmatmul.mubr.f32.gmra.mrb[0].mxu0 %v550
        %v723 = vpop.f32.mrb[0].mxu0
        %v724 = vadd.f32 %v634, %v723
        %v725 = vpop.f32.mrb[0].mxu0
        %v726 = vadd.f32 %v638, %v725
        %727 = vmatprep.mubr.f32.mxu0 0.0
        %728 = vmatmul.mubr.f32.gmra.mrb[0].mxu0 %v551
        %v729 = vpop.f32.mrb[0].mxu0
        %v730 = vadd.f32 %v634, %v729
        %v731 = vpop.f32.mrb[0].mxu0
        %v732 = vadd.f32 %v638, %v731
        %733 = vmatprep.mubr.f32.mxu0 0.0
        %734 = vmatmul.mubr.f32.gmra.mrb[0].mxu0 %v552
        %v735 = vpop.f32.mrb[0].mxu0
        %v736 = vadd.f32 %v634, %v735
        %v737 = vpop.f32.mrb[0].mxu0
        %v738 = vadd.f32 %v638, %v737
        %739 = vmatprep.mubr.f32.mxu0 0.0
        %740 = vmatmul.mubr.f32.gmra.mrb[0].mxu0 %v553
        %v741 = vpop.f32.mrb[0].mxu0
        %v742 = vadd.f32 %v634, %v741
        %v743 = vpop.f32.mrb[0].mxu0
        %v744 = vadd.f32 %v638, %v743
        %745 = vmatprep.mubr.f32.mxu0 0.0
        %746 = vmatmul.mubr.f32.gmra.mrb[0].mxu0 %v554
        %v747 = vpop.f32.mrb[0].mxu0
        %v748 = vadd.f32 %v634, %v747
        %v749 = vpop.f32.mrb[0].mxu0
        %v750 = vadd.f32 %v638, %v749
        %751 = vmatprep.mubr.f32.mxu0 0.0
        %752 = vmatmul.mubr.f32.gmra.mrb[0].mxu0 %v555
        %v753 = vpop.f32.mrb[0].mxu0
        %v754 = vadd.f32 %v634, %v753
        %v755 = vpop.f32.mrb[0].mxu0
        %v756 = vadd.f32 %v638, %v755
        %757 = vmatprep.mubr.f32.mxu0 0.0
        %758 = vmatmul.mubr.f32.gmra.mrb[0].mxu0 %v556
        %v759 = vpop.f32.mrb[0].mxu0
        %v760 = vadd.f32 %v634, %v759
        %v761 = vpop.f32.mrb[0].mxu0
        %v762 = vadd.f32 %v638, %v761
        %763 = vmatprep.mubr.f32.mxu0 0.0
        %764 = vmatmul.mubr.f32.gmra.mrb[0].mxu0 %v557
        %v765 = vpop.f32.mrb[0].mxu0
        %v766 = vadd.f32 %v634, %v765
        %v767 = vpop.f32.mrb[0].mxu0
        %v768 = vadd.f32 %v638, %v767
        %769 = vmatprep.mubr.f32.mxu0 0.0
        %770 = vmatmul.mubr.f32.gmra.mrb[0].mxu0 %v558
        %v771 = vpop.f32.mrb[0].mxu0
        %v772 = vadd.f32 %v634, %v771
        %v773 = vpop.f32.mrb[0].mxu0
        %v774 = vadd.f32 %v638, %v773
        %775 = vmatprep.mubr.f32.mxu0 0.0
        %776 = vmatmul.mubr.f32.gmra.mrb[0].mxu0 %v559
        %v777 = vpop.f32.mrb[0].mxu0
        %v778 = vadd.f32 %v634, %v777
        %v779 = vpop.f32.mrb[0].mxu0
        %v780 = vadd.f32 %v638, %v779
        %781 = vmatprep.mubr.f32.mxu0 0.0
        %782 = vmatmul.mubr.f32.gmra.mrb[0].mxu0 %v560
        %v783 = vpop.f32.mrb[0].mxu0
        %v784 = vadd.f32 %v634, %v783
        %v785 = vpop.f32.mrb[0].mxu0
        %v786 = vadd.f32 %v638, %v785
        %787 = vmatprep.mubr.f32.mxu0 0.0
        %788 = vmatmul.mubr.f32.gmra.mrb[0].mxu0 %v561
        %v789 = vpop.f32.mrb[0].mxu0
        %v790 = vadd.f32 %v634, %v789
        %v791 = vpop.f32.mrb[0].mxu0
        %v792 = vadd.f32 %v638, %v791
        %793 = vmatprep.mubr.f32.mxu0 0.0
        %794 = vmatmul.mubr.f32.gmra.mrb[0].mxu0 %v562
        %v795 = vpop.f32.mrb[0].mxu0
        %v796 = vadd.f32 %v634, %v795
        %v797 = vpop.f32.mrb[0].mxu0
        %v798 = vadd.f32 %v638, %v797
        %799 = vmatprep.mubr.f32.mxu0 0.0
        %800 = vmatmul.mubr.f32.gmra.mrb[0].mxu0 %v563
        %v801 = vpop.f32.mrb[0].mxu0
        %v802 = vadd.f32 %v634, %v801
        %v803 = vpop.f32.mrb[0].mxu0
        %v804 = vadd.f32 %v638, %v803
        %805 = vmatprep.mubr.f32.mxu0 0.0
        %806 = vmatmul.mubr.f32.gmra.mrb[0].mxu0 %v564
        %v807 = vpop.f32.mrb[0].mxu0
        %v808 = vadd.f32 %v634, %v807
        %v809 = vpop.f32.mrb[0].mxu0
        %v810 = vadd.f32 %v638, %v809
        %811 = vdwg.mxu0
        %812 = vmatprep.subr.mxu0 %v568
        %813 = vmatpush1.msra.mxu0 %v567
        %814 = vmatprep.subr.mxu0 %v572
        %815 = vmatpush1.msra.mxu0 %v571
        %816 = vmatprep.subr.mxu0 %v576
        %817 = vmatpush1.msra.mxu0 %v575
        %818 = vmatprep.subr.mxu0 %v580
        %819 = vmatpush1.msra.mxu0 %v579
        %820 = vmatprep.subr.mxu0 %v584
        %821 = vmatpush1.msra.mxu0 %v583
        %822 = vmatprep.subr.mxu0 %v588
        %823 = vmatpush1.msra.mxu0 %v587
        %824 = vmatprep.subr.mxu0 %v592
        %825 = vmatpush1.msra.mxu0 %v591
        %826 = vmatprep.subr.mxu0 %v596
        %827 = vmatpush1.msra.mxu0 %v595
        %828 = vmatprep.subr.mxu0 %v600
        %829 = vmatpush1.msra.mxu0 %v599
        %830 = vmatprep.subr.mxu0 %v604
        %831 = vmatpush1.msra.mxu0 %v603
        %832 = vmatprep.subr.mxu0 %v608
        %833 = vmatpush1.msra.mxu0 %v607
        %834 = vmatprep.subr.mxu0 %v612
        %835 = vmatpush1.msra.mxu0 %v611
        %836 = vmatprep.subr.mxu0 %v616
        %837 = vmatpush1.msra.mxu0 %v615
        %838 = vmatprep.subr.mxu0 %v620
        %839 = vmatpush1.msra.mxu0 %v619
        %840 = vmatprep.subr.mxu0 %v624
        %841 = vmatpush1.msra.mxu0 %v623
        %842 = vmatprep.subr.mxu0 %v628
        %843 = vmatpush1.msra.mxu0 %v627
        %844 = vmatprep.subr.mxu0 0.0
        %845 = vmatpush1.msra.mxu0 0.0
        %846 = vmatprep.subr.mxu0 0.0
        %847 = vmatpush1.msra.mxu0 0.0
        %848 = vmatprep.subr.mxu0 0.0
        %849 = vmatpush1.msra.mxu0 0.0
        %850 = vmatprep.subr.mxu0 0.0
        %851 = vmatpush1.msra.mxu0 0.0
        %852 = vmatprep.subr.mxu0 0.0
        %853 = vmatpush1.msra.mxu0 0.0
        %854 = vmatprep.subr.mxu0 0.0
        %855 = vmatpush1.msra.mxu0 0.0
        %856 = vmatprep.subr.mxu0 0.0
        %857 = vmatpush1.msra.mxu0 0.0
        %858 = vmatprep.subr.mxu0 0.0
        %859 = vmatpush1.msra.mxu0 0.0
        %860 = vmatprep.subr.mxu0 0.0
        %861 = vmatpush1.msra.mxu0 0.0
        %862 = vmatprep.subr.mxu0 0.0
        %863 = vmatpush1.msra.mxu0 0.0
        %864 = vmatprep.subr.mxu0 0.0
        %865 = vmatpush1.msra.mxu0 0.0
        %866 = vmatprep.subr.mxu0 0.0
        %867 = vmatpush1.msra.mxu0 0.0
        %868 = vmatprep.subr.mxu0 0.0
        %869 = vmatpush1.msra.mxu0 0.0
        %870 = vmatprep.subr.mxu0 0.0
        %871 = vmatpush1.msra.mxu0 0.0
        %872 = vmatprep.subr.mxu0 0.0
        %873 = vmatpush1.msra.mxu0 0.0
        %874 = vmatprep.subr.mxu0 0.0
        %875 = vmatpush1.msra.mxu0 0.0
        %876 = vmatprep.mubr.f32.mxu0 0.0
        %877 = vmatmul.mubr.f32.gmra.mrb[0].mxu0 %v549
        %v878 = vpop.f32.mrb[0].mxu0
        %v879 = vadd.f32 %v642, %v878
        %v880 = vpop.f32.mrb[0].mxu0
        %v881 = vadd.f32 %v646, %v880
        %882 = vmatprep.mubr.f32.mxu0 0.0
        %883 = vmatmul.mubr.f32.gmra.mrb[0].mxu0 %v550
        %v884 = vpop.f32.mrb[0].mxu0
        %v885 = vadd.f32 %v642, %v884
        %v886 = vpop.f32.mrb[0].mxu0
        %v887 = vadd.f32 %v646, %v886
        %888 = vmatprep.mubr.f32.mxu0 0.0
        %889 = vmatmul.mubr.f32.gmra.mrb[0].mxu0 %v551
        %v890 = vpop.f32.mrb[0].mxu0
        %v891 = vadd.f32 %v642, %v890
        %v892 = vpop.f32.mrb[0].mxu0
        %v893 = vadd.f32 %v646, %v892
        %894 = vmatprep.mubr.f32.mxu0 0.0
        %895 = vmatmul.mubr.f32.gmra.mrb[0].mxu0 %v552
        %v896 = vpop.f32.mrb[0].mxu0
        %v897 = vadd.f32 %v642, %v896
        %v898 = vpop.f32.mrb[0].mxu0
        %v899 = vadd.f32 %v646, %v898
        %900 = vmatprep.mubr.f32.mxu0 0.0
        %901 = vmatmul.mubr.f32.gmra.mrb[0].mxu0 %v553
        %v902 = vpop.f32.mrb[0].mxu0
        %v903 = vadd.f32 %v642, %v902
        %v904 = vpop.f32.mrb[0].mxu0
        %v905 = vadd.f32 %v646, %v904
        %906 = vmatprep.mubr.f32.mxu0 0.0
        %907 = vmatmul.mubr.f32.gmra.mrb[0].mxu0 %v554
        %v908 = vpop.f32.mrb[0].mxu0
        %v909 = vadd.f32 %v642, %v908
        %v910 = vpop.f32.mrb[0].mxu0
        %v911 = vadd.f32 %v646, %v910
        %912 = vmatprep.mubr.f32.mxu0 0.0
        %913 = vmatmul.mubr.f32.gmra.mrb[0].mxu0 %v555
        %v914 = vpop.f32.mrb[0].mxu0
        %v915 = vadd.f32 %v642, %v914
        %v916 = vpop.f32.mrb[0].mxu0
        %v917 = vadd.f32 %v646, %v916
        %918 = vmatprep.mubr.f32.mxu0 0.0
        %919 = vmatmul.mubr.f32.gmra.mrb[0].mxu0 %v556
        %v920 = vpop.f32.mrb[0].mxu0
        %v921 = vadd.f32 %v642, %v920
        %v922 = vpop.f32.mrb[0].mxu0
        %v923 = vadd.f32 %v646, %v922
        %924 = vmatprep.mubr.f32.mxu0 0.0
        %925 = vmatmul.mubr.f32.gmra.mrb[0].mxu0 %v557
        %v926 = vpop.f32.mrb[0].mxu0
        %v927 = vadd.f32 %v642, %v926
        %v928 = vpop.f32.mrb[0].mxu0
        %v929 = vadd.f32 %v646, %v928
        %930 = vmatprep.mubr.f32.mxu0 0.0
        %931 = vmatmul.mubr.f32.gmra.mrb[0].mxu0 %v558
        %v932 = vpop.f32.mrb[0].mxu0
        %v933 = vadd.f32 %v642, %v932
        %v934 = vpop.f32.mrb[0].mxu0
        %v935 = vadd.f32 %v646, %v934
        %936 = vmatprep.mubr.f32.mxu0 0.0
        %937 = vmatmul.mubr.f32.gmra.mrb[0].mxu0 %v559
        %v938 = vpop.f32.mrb[0].mxu0
        %v939 = vadd.f32 %v642, %v938
        %v940 = vpop.f32.mrb[0].mxu0
        %v941 = vadd.f32 %v646, %v940
        %942 = vmatprep.mubr.f32.mxu0 0.0
        %943 = vmatmul.mubr.f32.gmra.mrb[0].mxu0 %v560
        %v944 = vpop.f32.mrb[0].mxu0
        %v945 = vadd.f32 %v642, %v944
        %v946 = vpop.f32.mrb[0].mxu0
        %v947 = vadd.f32 %v646, %v946
        %948 = vmatprep.mubr.f32.mxu0 0.0
        %949 = vmatmul.mubr.f32.gmra.mrb[0].mxu0 %v561
        %v950 = vpop.f32.mrb[0].mxu0
        %v951 = vadd.f32 %v642, %v950
        %v952 = vpop.f32.mrb[0].mxu0
        %v953 = vadd.f32 %v646, %v952
        %954 = vmatprep.mubr.f32.mxu0 0.0
        %955 = vmatmul.mubr.f32.gmra.mrb[0].mxu0 %v562
        %v956 = vpop.f32.mrb[0].mxu0
        %v957 = vadd.f32 %v642, %v956
        %v958 = vpop.f32.mrb[0].mxu0
        %v959 = vadd.f32 %v646, %v958
        %960 = vmatprep.mubr.f32.mxu0 0.0
        %961 = vmatmul.mubr.f32.gmra.mrb[0].mxu0 %v563
        %v962 = vpop.f32.mrb[0].mxu0
        %v963 = vadd.f32 %v642, %v962
        %v964 = vpop.f32.mrb[0].mxu0
        %v965 = vadd.f32 %v646, %v964
        %966 = vmatprep.mubr.f32.mxu0 0.0
        %967 = vmatmul.mubr.f32.gmra.mrb[0].mxu0 %v564
        %v968 = vpop.f32.mrb[0].mxu0
        %v969 = vadd.f32 %v642, %v968
        %v970 = vpop.f32.mrb[0].mxu0
        %v971 = vadd.f32 %v646, %v970
        %972 = vdwg.mxu0
        %v973 = vmul.f32 %v718, 0.5
        %v974 = vmul.f32 %v720, 0.5
        %v975 = vmul.f32 %v724, 0.5
        %v976 = vmul.f32 %v726, 0.5
        %v977 = vmul.f32 %v730, 0.5
        %v978 = vmul.f32 %v732, 0.5
        %v979 = vmul.f32 %v736, 0.5
        %v980 = vmul.f32 %v738, 0.5
        %v981 = vmul.f32 %v742, 0.5
        %v982 = vmul.f32 %v744, 0.5
        %v983 = vmul.f32 %v748, 0.5
        %v984 = vmul.f32 %v750, 0.5
        %v985 = vmul.f32 %v754, 0.5
        %v986 = vmul.f32 %v756, 0.5
        %v987 = vmul.f32 %v760, 0.5
        %v988 = vmul.f32 %v762, 0.5
        %v989 = vmul.f32 %v766, 0.5
        %v990 = vmul.f32 %v768, 0.5
        %v991 = vmul.f32 %v772, 0.5
        %v992 = vmul.f32 %v774, 0.5
        %v993 = vmul.f32 %v778, 0.5
        %v994 = vmul.f32 %v780, 0.5
        %v995 = vmul.f32 %v784, 0.5
        %v996 = vmul.f32 %v786, 0.5
        %v997 = vmul.f32 %v790, 0.5
        %v998 = vmul.f32 %v792, 0.5
        %v999 = vmul.f32 %v796, 0.5
        %v1000 = vmul.f32 %v798, 0.5
        %v1001 = vmul.f32 %v802, 0.5
        %v1002 = vmul.f32 %v804, 0.5
        %v1003 = vmul.f32 %v808, 0.5
        %v1004 = vmul.f32 %v810, 0.5
        %v1005 = vmul.f32 %v718, 0.70710677
        %v1006 = vmul.f32 %v720, 0.70710677
        %v1007 = vmul.f32 %v724, 0.70710677
        %v1008 = vmul.f32 %v726, 0.70710677
        %v1009 = vmul.f32 %v730, 0.70710677
        %v1010 = vmul.f32 %v732, 0.70710677
        %v1011 = vmul.f32 %v736, 0.70710677
        %v1012 = vmul.f32 %v738, 0.70710677
        %v1013 = vmul.f32 %v742, 0.70710677
        %v1014 = vmul.f32 %v744, 0.70710677
        %v1015 = vmul.f32 %v748, 0.70710677
        %v1016 = vmul.f32 %v750, 0.70710677
        %v1017 = vmul.f32 %v754, 0.70710677
        %v1018 = vmul.f32 %v756, 0.70710677
        %v1019 = vmul.f32 %v760, 0.70710677
        %v1020 = vmul.f32 %v762, 0.70710677
        %v1021 = vmul.f32 %v766, 0.70710677
        %v1022 = vmul.f32 %v768, 0.70710677
        %v1023 = vmul.f32 %v772, 0.70710677
        %v1024 = vmul.f32 %v774, 0.70710677
        %v1025 = vmul.f32 %v778, 0.70710677
        %v1026 = vmul.f32 %v780, 0.70710677
        %v1027 = vmul.f32 %v784, 0.70710677
        %v1028 = vmul.f32 %v786, 0.70710677
        %v1029 = vmul.f32 %v790, 0.70710677
        %v1030 = vmul.f32 %v792, 0.70710677
        %v1031 = vmul.f32 %v796, 0.70710677
        %v1032 = vmul.f32 %v798, 0.70710677
        %v1033 = vmul.f32 %v802, 0.70710677
        %v1034 = vmul.f32 %v804, 0.70710677
        %v1035 = vmul.f32 %v808, 0.70710677
        %v1036 = vmul.f32 %v810, 0.70710677
        %v1037 = verf.f32.pop %v1005
        %v1038 = verf.f32.pop %v1006
        %v1039 = verf.f32.pop %v1007
        %v1040 = verf.f32.pop %v1008
        %v1041 = verf.f32.pop %v1009
        %v1042 = verf.f32.pop %v1010
        %v1043 = verf.f32.pop %v1011
        %v1044 = verf.f32.pop %v1012
        %v1045 = verf.f32.pop %v1013
        %v1046 = verf.f32.pop %v1014
        %v1047 = verf.f32.pop %v1015
        %v1048 = verf.f32.pop %v1016
        %v1049 = verf.f32.pop %v1017
        %v1050 = verf.f32.pop %v1018
        %v1051 = verf.f32.pop %v1019
        %v1052 = verf.f32.pop %v1020
        %v1053 = verf.f32.pop %v1021
        %v1054 = verf.f32.pop %v1022
        %v1055 = verf.f32.pop %v1023
        %v1056 = verf.f32.pop %v1024
        %v1057 = verf.f32.pop %v1025
        %v1058 = verf.f32.pop %v1026
        %v1059 = verf.f32.pop %v1027
        %v1060 = verf.f32.pop %v1028
        %v1061 = verf.f32.pop %v1029
        %v1062 = verf.f32.pop %v1030
        %v1063 = verf.f32.pop %v1031
        %v1064 = verf.f32.pop %v1032
        %v1065 = verf.f32.pop %v1033
        %v1066 = verf.f32.pop %v1034
        %v1067 = verf.f32.pop %v1035
        %v1068 = verf.f32.pop %v1036
        %v1069 = vadd.f32 %v1037, 1.0
        %v1070 = vadd.f32 %v1038, 1.0
        %v1071 = vadd.f32 %v1039, 1.0
        %v1072 = vadd.f32 %v1040, 1.0
        %v1073 = vadd.f32 %v1041, 1.0
        %v1074 = vadd.f32 %v1042, 1.0
        %v1075 = vadd.f32 %v1043, 1.0
        %v1076 = vadd.f32 %v1044, 1.0
        %v1077 = vadd.f32 %v1045, 1.0
        %v1078 = vadd.f32 %v1046, 1.0
        %v1079 = vadd.f32 %v1047, 1.0
        %v1080 = vadd.f32 %v1048, 1.0
        %v1081 = vadd.f32 %v1049, 1.0
        %v1082 = vadd.f32 %v1050, 1.0
        %v1083 = vadd.f32 %v1051, 1.0
        %v1084 = vadd.f32 %v1052, 1.0
        %v1085 = vadd.f32 %v1053, 1.0
        %v1086 = vadd.f32 %v1054, 1.0
        %v1087 = vadd.f32 %v1055, 1.0
        %v1088 = vadd.f32 %v1056, 1.0
        %v1089 = vadd.f32 %v1057, 1.0
        %v1090 = vadd.f32 %v1058, 1.0
        %v1091 = vadd.f32 %v1059, 1.0
        %v1092 = vadd.f32 %v1060, 1.0
        %v1093 = vadd.f32 %v1061, 1.0
        %v1094 = vadd.f32 %v1062, 1.0
        %v1095 = vadd.f32 %v1063, 1.0
        %v1096 = vadd.f32 %v1064, 1.0
        %v1097 = vadd.f32 %v1065, 1.0
        %v1098 = vadd.f32 %v1066, 1.0
        %v1099 = vadd.f32 %v1067, 1.0
        %v1100 = vadd.f32 %v1068, 1.0
        %v1101 = vmul.f32 %v973, %v1069
        %v1102 = vmul.f32 %v974, %v1070
        %v1103 = vmul.f32 %v975, %v1071
        %v1104 = vmul.f32 %v976, %v1072
        %v1105 = vmul.f32 %v977, %v1073
        %v1106 = vmul.f32 %v978, %v1074
        %v1107 = vmul.f32 %v979, %v1075
        %v1108 = vmul.f32 %v980, %v1076
        %v1109 = vmul.f32 %v981, %v1077
        %v1110 = vmul.f32 %v982, %v1078
        %v1111 = vmul.f32 %v983, %v1079
        %v1112 = vmul.f32 %v984, %v1080
        %v1113 = vmul.f32 %v985, %v1081
        %v1114 = vmul.f32 %v986, %v1082
        %v1115 = vmul.f32 %v987, %v1083
        %v1116 = vmul.f32 %v988, %v1084
        %v1117 = vmul.f32 %v989, %v1085
        %v1118 = vmul.f32 %v990, %v1086
        %v1119 = vmul.f32 %v991, %v1087
        %v1120 = vmul.f32 %v992, %v1088
        %v1121 = vmul.f32 %v993, %v1089
        %v1122 = vmul.f32 %v994, %v1090
        %v1123 = vmul.f32 %v995, %v1091
        %v1124 = vmul.f32 %v996, %v1092
        %v1125 = vmul.f32 %v997, %v1093
        %v1126 = vmul.f32 %v998, %v1094
        %v1127 = vmul.f32 %v999, %v1095
        %v1128 = vmul.f32 %v1000, %v1096
        %v1129 = vmul.f32 %v1001, %v1097
        %v1130 = vmul.f32 %v1002, %v1098
        %v1131 = vmul.f32 %v1003, %v1099
        %v1132 = vmul.f32 %v1004, %v1100
        %v1133 = vmul.f32 %v1101, %v879
        %v1134 = vmul.f32 %v1102, %v881
        %v1135 = vmul.f32 %v1103, %v885
        %v1136 = vmul.f32 %v1104, %v887
        %v1137 = vmul.f32 %v1105, %v891
        %v1138 = vmul.f32 %v1106, %v893
        %v1139 = vmul.f32 %v1107, %v897
        %v1140 = vmul.f32 %v1108, %v899
        %v1141 = vmul.f32 %v1109, %v903
        %v1142 = vmul.f32 %v1110, %v905
        %v1143 = vmul.f32 %v1111, %v909
        %v1144 = vmul.f32 %v1112, %v911
        %v1145 = vmul.f32 %v1113, %v915
        %v1146 = vmul.f32 %v1114, %v917
        %v1147 = vmul.f32 %v1115, %v921
        %v1148 = vmul.f32 %v1116, %v923
        %v1149 = vmul.f32 %v1117, %v927
        %v1150 = vmul.f32 %v1118, %v929
        %v1151 = vmul.f32 %v1119, %v933
        %v1152 = vmul.f32 %v1120, %v935
        %v1153 = vmul.f32 %v1121, %v939
        %v1154 = vmul.f32 %v1122, %v941
        %v1155 = vmul.f32 %v1123, %v945
        %v1156 = vmul.f32 %v1124, %v947
        %v1157 = vmul.f32 %v1125, %v951
        %v1158 = vmul.f32 %v1126, %v953
        %v1159 = vmul.f32 %v1127, %v957
        %v1160 = vmul.f32 %v1128, %v959
        %v1161 = vmul.f32 %v1129, %v963
        %v1162 = vmul.f32 %v1130, %v965
        %v1163 = vmul.f32 %v1131, %v969
        %v1164 = vmul.f32 %v1132, %v971
        %v1165 = vld [vmem:[#allocation3] sm:$0xff]
        %v1166 = vld [vmem:[#allocation3 + $0x8] sm:$0xff]
        %v1167 = vld [vmem:[#allocation3 + $0x10] sm:$0xff]
        %v1168 = vld [vmem:[#allocation3 + $0x18] sm:$0xff]
        %v1169 = vld [vmem:[#allocation3 + $0x20] sm:$0xff]
        %v1170 = vld [vmem:[#allocation3 + $0x28] sm:$0xff]
        %v1171 = vld [vmem:[#allocation3 + $0x30] sm:$0xff]
        %v1172 = vld [vmem:[#allocation3 + $0x38] sm:$0xff]
        %v1173 = vld [vmem:[#allocation3 + $0x40] sm:$0xff]
        %v1174 = vld [vmem:[#allocation3 + $0x48] sm:$0xff]
        %v1175 = vld [vmem:[#allocation3 + $0x50] sm:$0xff]
        %v1176 = vld [vmem:[#allocation3 + $0x58] sm:$0xff]
        %v1177 = vld [vmem:[#allocation3 + $0x60] sm:$0xff]
        %v1178 = vld [vmem:[#allocation3 + $0x68] sm:$0xff]
        %v1179 = vld [vmem:[#allocation3 + $0x70] sm:$0xff]
        %v1180 = vld [vmem:[#allocation3 + $0x78] sm:$0xff]
        %v1181 = vld [vmem:[#allocation9] sm:$0xff]
        %v1182 = vld [vmem:[#allocation9 + $0x8] sm:$0xff]
        %v1183 = vld [vmem:[#allocation9 + $0x10] sm:$0xff]
        %v1184 = vld [vmem:[#allocation9 + $0x18] sm:$0xff]
        %v1185 = vld [vmem:[#allocation9 + $0x20] sm:$0xff]
        %v1186 = vld [vmem:[#allocation9 + $0x28] sm:$0xff]
        %v1187 = vld [vmem:[#allocation9 + $0x30] sm:$0xff]
        %v1188 = vld [vmem:[#allocation9 + $0x38] sm:$0xff]
        %v1189 = vld [vmem:[#allocation9 + $0x40] sm:$0xff]
        %v1190 = vld [vmem:[#allocation9 + $0x48] sm:$0xff]
        %v1191 = vld [vmem:[#allocation9 + $0x50] sm:$0xff]
        %v1192 = vld [vmem:[#allocation9 + $0x58] sm:$0xff]
        %v1193 = vld [vmem:[#allocation9 + $0x60] sm:$0xff]
        %v1194 = vld [vmem:[#allocation9 + $0x68] sm:$0xff]
        %v1195 = vld [vmem:[#allocation9 + $0x70] sm:$0xff]
        %v1196 = vld [vmem:[#allocation9 + $0x78] sm:$0xff]
        %v1197 = vld [vmem:[#allocation9 + $0x80] sm:$0xff]
        %v1198 = vld [vmem:[#allocation9 + $0x88] sm:$0xff]
        %v1199 = vld [vmem:[#allocation9 + $0x90] sm:$0xff]
        %v1200 = vld [vmem:[#allocation9 + $0x98] sm:$0xff]
        %v1201 = vld [vmem:[#allocation9 + $0xa0] sm:$0xff]
        %v1202 = vld [vmem:[#allocation9 + $0xa8] sm:$0xff]
        %v1203 = vld [vmem:[#allocation9 + $0xb0] sm:$0xff]
        %v1204 = vld [vmem:[#allocation9 + $0xb8] sm:$0xff]
        %v1205 = vld [vmem:[#allocation9 + $0xc0] sm:$0xff]
        %v1206 = vld [vmem:[#allocation9 + $0xc8] sm:$0xff]
        %v1207 = vld [vmem:[#allocation9 + $0xd0] sm:$0xff]
        %v1208 = vld [vmem:[#allocation9 + $0xd8] sm:$0xff]
        %v1209 = vld [vmem:[#allocation9 + $0xe0] sm:$0xff]
        %v1210 = vld [vmem:[#allocation9 + $0xe8] sm:$0xff]
        %v1211 = vld [vmem:[#allocation9 + $0xf0] sm:$0xff]
        %v1212 = vld [vmem:[#allocation9 + $0xf8] sm:$0xff]
        %1213 = vmatprep.subr.mxu0 0.0
        %1214 = vmatpush1.msra.mxu0 %v1181
        %1215 = vmatprep.subr.mxu0 0.0
        %1216 = vmatpush1.msra.mxu0 %v1182
        %1217 = vmatprep.subr.mxu0 0.0
        %1218 = vmatpush1.msra.mxu0 %v1183
        %1219 = vmatprep.subr.mxu0 0.0
        %1220 = vmatpush1.msra.mxu0 %v1184
        %1221 = vmatprep.subr.mxu0 0.0
        %1222 = vmatpush1.msra.mxu0 %v1185
        %1223 = vmatprep.subr.mxu0 0.0
        %1224 = vmatpush1.msra.mxu0 %v1186
        %1225 = vmatprep.subr.mxu0 0.0
        %1226 = vmatpush1.msra.mxu0 %v1187
        %1227 = vmatprep.subr.mxu0 0.0
        %1228 = vmatpush1.msra.mxu0 %v1188
        %1229 = vmatprep.subr.mxu0 0.0
        %1230 = vmatpush1.msra.mxu0 %v1189
        %1231 = vmatprep.subr.mxu0 0.0
        %1232 = vmatpush1.msra.mxu0 %v1190
        %1233 = vmatprep.subr.mxu0 0.0
        %1234 = vmatpush1.msra.mxu0 %v1191
        %1235 = vmatprep.subr.mxu0 0.0
        %1236 = vmatpush1.msra.mxu0 %v1192
        %1237 = vmatprep.subr.mxu0 0.0
        %1238 = vmatpush1.msra.mxu0 %v1193
        %1239 = vmatprep.subr.mxu0 0.0
        %1240 = vmatpush1.msra.mxu0 %v1194
        %1241 = vmatprep.subr.mxu0 0.0
        %1242 = vmatpush1.msra.mxu0 %v1195
        %1243 = vmatprep.subr.mxu0 0.0
        %1244 = vmatpush1.msra.mxu0 %v1196
        %1245 = vmatprep.subr.mxu0 0.0
        %1246 = vmatpush1.msra.mxu0 %v1197
        %1247 = vmatprep.subr.mxu0 0.0
        %1248 = vmatpush1.msra.mxu0 %v1198
        %1249 = vmatprep.subr.mxu0 0.0
        %1250 = vmatpush1.msra.mxu0 %v1199
        %1251 = vmatprep.subr.mxu0 0.0
        %1252 = vmatpush1.msra.mxu0 %v1200
        %1253 = vmatprep.subr.mxu0 0.0
        %1254 = vmatpush1.msra.mxu0 %v1201
        %1255 = vmatprep.subr.mxu0 0.0
        %1256 = vmatpush1.msra.mxu0 %v1202
        %1257 = vmatprep.subr.mxu0 0.0
        %1258 = vmatpush1.msra.mxu0 %v1203
        %1259 = vmatprep.subr.mxu0 0.0
        %1260 = vmatpush1.msra.mxu0 %v1204
        %1261 = vmatprep.subr.mxu0 0.0
        %1262 = vmatpush1.msra.mxu0 %v1205
        %1263 = vmatprep.subr.mxu0 0.0
        %1264 = vmatpush1.msra.mxu0 %v1206
        %1265 = vmatprep.subr.mxu0 0.0
        %1266 = vmatpush1.msra.mxu0 %v1207
        %1267 = vmatprep.subr.mxu0 0.0
        %1268 = vmatpush1.msra.mxu0 %v1208
        %1269 = vmatprep.subr.mxu0 0.0
        %1270 = vmatpush1.msra.mxu0 %v1209
        %1271 = vmatprep.subr.mxu0 0.0
        %1272 = vmatpush1.msra.mxu0 %v1210
        %1273 = vmatprep.subr.mxu0 0.0
        %1274 = vmatpush1.msra.mxu0 %v1211
        %1275 = vmatprep.subr.mxu0 0.0
        %1276 = vmatpush1.msra.mxu0 %v1212
        %1277 = vmatprep.mubr.f32.mxu0 %v1134
        %1278 = vmatmul.mubr.f32.gmra.mrb[0].mxu0 %v1133
        %v1279 = vpop.f32.mrb[0].mxu0
        %v1280 = vadd.f32 0.0, %v1279
        %v1281 = vpop.f32.mrb[0].mxu0
        %1282 = vmatprep.mubr.f32.mxu0 %v1136
        %1283 = vmatmul.mubr.f32.gmra.mrb[0].mxu0 %v1135
        %v1284 = vpop.f32.mrb[0].mxu0
        %v1285 = vadd.f32 0.0, %v1284
        %v1286 = vpop.f32.mrb[0].mxu0
        %1287 = vmatprep.mubr.f32.mxu0 %v1138
        %1288 = vmatmul.mubr.f32.gmra.mrb[0].mxu0 %v1137
        %v1289 = vpop.f32.mrb[0].mxu0
        %v1290 = vadd.f32 0.0, %v1289
        %v1291 = vpop.f32.mrb[0].mxu0
        %1292 = vmatprep.mubr.f32.mxu0 %v1140
        %1293 = vmatmul.mubr.f32.gmra.mrb[0].mxu0 %v1139
        %v1294 = vpop.f32.mrb[0].mxu0
        %v1295 = vadd.f32 0.0, %v1294
        %v1296 = vpop.f32.mrb[0].mxu0
        %1297 = vmatprep.mubr.f32.mxu0 %v1142
        %1298 = vmatmul.mubr.f32.gmra.mrb[0].mxu0 %v1141
        %v1299 = vpop.f32.mrb[0].mxu0
        %v1300 = vadd.f32 0.0, %v1299
        %v1301 = vpop.f32.mrb[0].mxu0
        %1302 = vmatprep.mubr.f32.mxu0 %v1144
        %1303 = vmatmul.mubr.f32.gmra.mrb[0].mxu0 %v1143
        %v1304 = vpop.f32.mrb[0].mxu0
        %v1305 = vadd.f32 0.0, %v1304
        %v1306 = vpop.f32.mrb[0].mxu0
        %1307 = vmatprep.mubr.f32.mxu0 %v1146
        %1308 = vmatmul.mubr.f32.gmra.mrb[0].mxu0 %v1145
        %v1309 = vpop.f32.mrb[0].mxu0
        %v1310 = vadd.f32 0.0, %v1309
        %v1311 = vpop.f32.mrb[0].mxu0
        %1312 = vmatprep.mubr.f32.mxu0 %v1148
        %1313 = vmatmul.mubr.f32.gmra.mrb[0].mxu0 %v1147
        %v1314 = vpop.f32.mrb[0].mxu0
        %v1315 = vadd.f32 0.0, %v1314
        %v1316 = vpop.f32.mrb[0].mxu0
        %1317 = vmatprep.mubr.f32.mxu0 %v1150
        %1318 = vmatmul.mubr.f32.gmra.mrb[0].mxu0 %v1149
        %v1319 = vpop.f32.mrb[0].mxu0
        %v1320 = vadd.f32 0.0, %v1319
        %v1321 = vpop.f32.mrb[0].mxu0
        %1322 = vmatprep.mubr.f32.mxu0 %v1152
        %1323 = vmatmul.mubr.f32.gmra.mrb[0].mxu0 %v1151
        %v1324 = vpop.f32.mrb[0].mxu0
        %v1325 = vadd.f32 0.0, %v1324
        %v1326 = vpop.f32.mrb[0].mxu0
        %1327 = vmatprep.mubr.f32.mxu0 %v1154
        %1328 = vmatmul.mubr.f32.gmra.mrb[0].mxu0 %v1153
        %v1329 = vpop.f32.mrb[0].mxu0
        %v1330 = vadd.f32 0.0, %v1329
        %v1331 = vpop.f32.mrb[0].mxu0
        %1332 = vmatprep.mubr.f32.mxu0 %v1156
        %1333 = vmatmul.mubr.f32.gmra.mrb[0].mxu0 %v1155
        %v1334 = vpop.f32.mrb[0].mxu0
        %v1335 = vadd.f32 0.0, %v1334
        %v1336 = vpop.f32.mrb[0].mxu0
        %1337 = vmatprep.mubr.f32.mxu0 %v1158
        %1338 = vmatmul.mubr.f32.gmra.mrb[0].mxu0 %v1157
        %v1339 = vpop.f32.mrb[0].mxu0
        %v1340 = vadd.f32 0.0, %v1339
        %v1341 = vpop.f32.mrb[0].mxu0
        %1342 = vmatprep.mubr.f32.mxu0 %v1160
        %1343 = vmatmul.mubr.f32.gmra.mrb[0].mxu0 %v1159
        %v1344 = vpop.f32.mrb[0].mxu0
        %v1345 = vadd.f32 0.0, %v1344
        %v1346 = vpop.f32.mrb[0].mxu0
        %1347 = vmatprep.mubr.f32.mxu0 %v1162
        %1348 = vmatmul.mubr.f32.gmra.mrb[0].mxu0 %v1161
        %v1349 = vpop.f32.mrb[0].mxu0
        %v1350 = vadd.f32 0.0, %v1349
        %v1351 = vpop.f32.mrb[0].mxu0
        %1352 = vmatprep.mubr.f32.mxu0 %v1164
        %1353 = vmatmul.mubr.f32.gmra.mrb[0].mxu0 %v1163
        %v1354 = vpop.f32.mrb[0].mxu0
        %v1355 = vadd.f32 0.0, %v1354
        %v1356 = vpop.f32.mrb[0].mxu0
        %1357 = vdwg.mxu0
        %v1358 = vadd.f32 %v1165, %v1280
        %v1359 = vadd.f32 %v1166, %v1285
        %v1360 = vadd.f32 %v1167, %v1290
        %v1361 = vadd.f32 %v1168, %v1295
        %v1362 = vadd.f32 %v1169, %v1300
        %v1363 = vadd.f32 %v1170, %v1305
        %v1364 = vadd.f32 %v1171, %v1310
        %v1365 = vadd.f32 %v1172, %v1315
        %v1366 = vadd.f32 %v1173, %v1320
        %v1367 = vadd.f32 %v1174, %v1325
        %v1368 = vadd.f32 %v1175, %v1330
        %v1369 = vadd.f32 %v1176, %v1335
        %v1370 = vadd.f32 %v1177, %v1340
        %v1371 = vadd.f32 %v1178, %v1345
        %v1372 = vadd.f32 %v1179, %v1350
        %v1373 = vadd.f32 %v1180, %v1355
        %1374 = vst [vmem:[#allocation3] sm:$0xff] %v1358
        %1375 = vst [vmem:[#allocation3 + $0x8] sm:$0xff] %v1359
        %1376 = vst [vmem:[#allocation3 + $0x10] sm:$0xff] %v1360
        %1377 = vst [vmem:[#allocation3 + $0x18] sm:$0xff] %v1361
        %1378 = vst [vmem:[#allocation3 + $0x20] sm:$0xff] %v1362
        %1379 = vst [vmem:[#allocation3 + $0x28] sm:$0xff] %v1363
        %1380 = vst [vmem:[#allocation3 + $0x30] sm:$0xff] %v1364
        %1381 = vst [vmem:[#allocation3 + $0x38] sm:$0xff] %v1365
        %1382 = vst [vmem:[#allocation3 + $0x40] sm:$0xff] %v1366
        %1383 = vst [vmem:[#allocation3 + $0x48] sm:$0xff] %v1367
        %1384 = vst [vmem:[#allocation3 + $0x50] sm:$0xff] %v1368
        %1385 = vst [vmem:[#allocation3 + $0x58] sm:$0xff] %v1369
        %1386 = vst [vmem:[#allocation3 + $0x60] sm:$0xff] %v1370
        %1387 = vst [vmem:[#allocation3 + $0x68] sm:$0xff] %v1371
        %1388 = vst [vmem:[#allocation3 + $0x70] sm:$0xff] %v1372
        %1389 = vst [vmem:[#allocation3 + $0x78] sm:$0xff] %v1373
        // Predicated region
        $region57: #{tpu_custom_call.1} parent=39 // pred_check
          %p1390 = pneg %p320
        $region58: #{tpu_custom_call.1} parent=39 // pred_check_branch
          %1392 = sbr.rel (%p1390) target = $region60
        $region59: #{tpu_custom_call.1} parent=39 // pred_region
          %v1393 = vld [vmem:[#allocation3] sm:$0xff]
          %v1394 = vld [vmem:[#allocation3 + $0x8] sm:$0xff]
          %v1395 = vld [vmem:[#allocation3 + $0x10] sm:$0xff]
          %v1396 = vld [vmem:[#allocation3 + $0x18] sm:$0xff]
          %v1397 = vld [vmem:[#allocation3 + $0x20] sm:$0xff]
          %v1398 = vld [vmem:[#allocation3 + $0x28] sm:$0xff]
          %v1399 = vld [vmem:[#allocation3 + $0x30] sm:$0xff]
          %v1400 = vld [vmem:[#allocation3 + $0x38] sm:$0xff]
          %v1401 = vld [vmem:[#allocation3 + $0x40] sm:$0xff]
          %v1402 = vld [vmem:[#allocation3 + $0x48] sm:$0xff]
          %v1403 = vld [vmem:[#allocation3 + $0x50] sm:$0xff]
          %v1404 = vld [vmem:[#allocation3 + $0x58] sm:$0xff]
          %v1405 = vld [vmem:[#allocation3 + $0x60] sm:$0xff]
          %v1406 = vld [vmem:[#allocation3 + $0x68] sm:$0xff]
          %v1407 = vld [vmem:[#allocation3 + $0x70] sm:$0xff]
          %v1408 = vld [vmem:[#allocation3 + $0x78] sm:$0xff]
          %v1409 = vld [vmem:[%s4] sm:$0x1]
          %v1411 = vlaneseq
          %v1412 = vshrl.u32 %v1411, 7
          %v1413 = vsub.s32 0, %v1412
          %v1414 = vrot.slane %v1409, %v1413
          %v1416 = vadd.f32 %v1393, %v1414
          %v1417 = vadd.f32 %v1394, %v1414
          %v1418 = vadd.f32 %v1395, %v1414
          %v1419 = vadd.f32 %v1396, %v1414
          %v1420 = vadd.f32 %v1397, %v1414
          %v1421 = vadd.f32 %v1398, %v1414
          %v1422 = vadd.f32 %v1399, %v1414
          %v1423 = vadd.f32 %v1400, %v1414
          %v1424 = vadd.f32 %v1401, %v1414
          %v1425 = vadd.f32 %v1402, %v1414
          %v1426 = vadd.f32 %v1403, %v1414
          %v1427 = vadd.f32 %v1404, %v1414
          %v1428 = vadd.f32 %v1405, %v1414
          %v1429 = vadd.f32 %v1406, %v1414
          %v1430 = vadd.f32 %v1407, %v1414
          %v1431 = vadd.f32 %v1408, %v1414
          %1432 = vst [vmem:[%s312] sm:$0xff] %v1416
          %1433 = vst [vmem:[%s312 + $0x8] sm:$0xff] %v1417
          %1434 = vst [vmem:[%s312 + $0x10] sm:$0xff] %v1418
          %1435 = vst [vmem:[%s312 + $0x18] sm:$0xff] %v1419
          %1436 = vst [vmem:[%s312 + $0x20] sm:$0xff] %v1420
          %1437 = vst [vmem:[%s312 + $0x28] sm:$0xff] %v1421
          %1438 = vst [vmem:[%s312 + $0x30] sm:$0xff] %v1422
          %1439 = vst [vmem:[%s312 + $0x38] sm:$0xff] %v1423
          %1440 = vst [vmem:[%s312 + $0x40] sm:$0xff] %v1424
          %1441 = vst [vmem:[%s312 + $0x48] sm:$0xff] %v1425
          %1442 = vst [vmem:[%s312 + $0x50] sm:$0xff] %v1426
          %1443 = vst [vmem:[%s312 + $0x58] sm:$0xff] %v1427
          %1444 = vst [vmem:[%s312 + $0x60] sm:$0xff] %v1428
          %1445 = vst [vmem:[%s312 + $0x68] sm:$0xff] %v1429
          %1446 = vst [vmem:[%s312 + $0x70] sm:$0xff] %v1430
          %1447 = vst [vmem:[%s312 + $0x78] sm:$0xff] %v1431
        $region60: #{tpu_custom_call.1} parent=39 // pred_fallthru
          _
        %s1448 = sand.u32 %s168, 1
        %s1449 = scalar_lea.sflag [#allocation6], %s1448
        %s1450 = sand.u32 %s168, 1
        %s1451 = smul.addr %s1450, 128
        %s1452 = scalar_lea.vmem [#allocation10], %s1451
        // Predicated region
        $region61: #{tpu_custom_call.1} parent=39 // pred_check
          %p1453 = pneg %p178
        $region62: #{tpu_custom_call.1} parent=39 // pred_check_branch
          %1455 = sbr.rel (%p1453) target = $region64
        $region63: #{tpu_custom_call.1} parent=39 // pred_region
          %s1456 = smul.u32 16, %s27
          %s1458 = ssub.s32 2048, 2048
          %1459 = vsyncadd %s1449, %s1458
          %s1460 = smul.addr %s1456, 128
          %s1461 = scalar_lea.hbm %s5, %s1460
          %s1462 = sshll.u32 %s1452, 4
          %s1463 = int_to_ptr.vmem [resolvable:$true] %s1462
          %1468 = dma.vmem_to_hbm [thread:$0]  %s1463, 2048, %s1461, %s1449, 128, 128, 8
        $region64: #{tpu_custom_call.1} parent=39 // pred_fallthru
          _
      $region40: #{tpu_custom_call.1} parent=5 // pred_fallthru
        _
      %p1469 = scmp.le.s32.totalorder 2, %s18
      // Predicated region
      $region65: #{tpu_custom_call.1} parent=5 // pred_check
        %p1470 = pneg %p1469
      $region66: #{tpu_custom_call.1} parent=5 // pred_check_branch
        %1472 = sbr.rel (%p1470) target = $region68
      $region67: #{tpu_custom_call.1} parent=5 // pred_region
        %s1473 = ssub.s32 %s18, 2
        // Predicated region
        $region69: #{tpu_custom_call.1} parent=67 // pred_check
          %p1474 = pneg %p184
        $region70: #{tpu_custom_call.1} parent=67 // pred_check_branch
          %1476 = sbr.rel (%p1474) target = $region72
        $region71: #{tpu_custom_call.1} parent=67 // pred_region
          %s1477 = sand.u32 %s169, 1
          %s1478 = scalar_lea.sflag [#allocation6], %s1477
          %s1479 = sand.u32 %s169, 1
          %s1480 = smul.addr %s1479, 128
          %s1481 = scalar_lea.vmem [#allocation10], %s1480
          %1482 = dma.done %s1478, 2048
        $region72: #{tpu_custom_call.1} parent=67 // pred_fallthru
          _
      $region68: #{tpu_custom_call.1} parent=5 // pred_fallthru
        _
    $region6: #{tpu_custom_call.1} parent=1 // loop_footer
      %s22 = sadd.s32 1, %s18
    $region7: #{tpu_custom_call.1} parent=1 // loop_footer_branch
      %17 = sbr.rel target = $region3
    $region8: #{tpu_custom_call.1} parent=1 // loop_exit
      _
    %1483 = vsyncpa [#allocation5], 1
    %s1484 = scalar_lea.sflag [#allocation5], 1
    %1485 = vsyncpa %s1484, 1
    %1486 = vsyncpa [#allocation8], 1
    %1487 = vsyncpa [#allocation6], 1
    %s1488 = scalar_lea.sflag [#allocation6], 1
    %1489 = vsyncpa %s1488, 1

</llo_original>
